<compile_context>
chip_gen: v5e
topology: v5e:2x2
jax: 0.10.0
libtpu: 0.0.40
codegen_flags: <defaults>
</compile_context>

<pallas_src>
import functools

import jax
import jax.numpy as jnp
from jax.experimental import pallas as pl
from jax.experimental.pallas import tpu as pltpu

_NEG_BIG = -1.0e30  # finite "-inf" sentinel: keeps exp()/max() NaN-free for
                    # masked tail rows and never-touched accumulator positions.


def _mine_kernel(c_ref, x1_ref, x2_ref, wt_ref, wtb_ref, sel_ref,
                 pos_out, m_out, l_out,
                 pos_acc, m_acc, l_acc,
                 *, rows_total, steps_per_core):
    g = pl.program_id(1)

    # ---- init per-core accumulators at the start of this core's slice ------
    @pl.when(g == 0)
    def _():
        pos_acc[...] = jnp.zeros_like(pos_acc)
        m_acc[...] = jnp.full_like(m_acc, _NEG_BIG)
        l_acc[...] = jnp.zeros_like(l_acc)

    tb = c_ref.shape[0]
    sub, kdim = pos_acc.shape
    ndim = m_acc.shape[1]
    groups = tb // sub

    # Valid-row mask (tail tiles may be partial, or fully clamped duplicates).
    row0 = (pl.program_id(0) * steps_per_core + g) * tb
    rows = jax.lax.broadcasted_iota(jnp.int32, (tb, 1), 0) + row0
    valid = rows < rows_total                                    # (tb, 1)

    cf = c_ref[...].astype(jnp.float32)

    # ---- positive term: P = C @ W^T, masked product, VALU row-group sum ----
    P = jnp.dot(cf, wt_ref[...].astype(jnp.float32),
                preferred_element_type=jnp.float32)              # (tb, K)
    pos_prod = jnp.where(valid, x1_ref[...].astype(jnp.float32) * P, 0.0)
    pos_acc[...] = pos_acc[...] + jnp.sum(
        pos_prod.reshape(groups, sub, kdim), axis=0)             # (sub, K)

    # ---- negative term: lane-dense x2, MXU segmented K-reduce --------------
    # Pbig[b, n*K+k] = P[b, k] comes straight off the MXU (tiled W^T), the
    # elementwise product runs on dense lanes (VPU), and the sum over K is a
    # single MXU matmul against the block-diagonal selection matrix.
    Pbig = jnp.dot(cf, wtb_ref[...].astype(jnp.float32),
                   preferred_element_type=jnp.float32)           # (tb, N*K)
    prod = x2_ref[...].astype(jnp.float32) * Pbig                # VPU
    neg = jnp.dot(prod, sel_ref[...],
                  preferred_element_type=jnp.float32)            # (tb, N) MXU
    neg = jnp.where(valid, neg, _NEG_BIG)

    # ---- online logsumexp with small (sub, N) vector accumulators ----------
    # (vreg-group max/sum over the leading axis is pure VALU; exp is EUP.)
    r = neg.reshape(groups, sub, ndim)
    m_old = m_acc[...]
    m_new = jnp.maximum(m_old, jnp.max(r, axis=0))
    l_acc[...] = (l_acc[...] * jnp.exp(m_old - m_new)
                  + jnp.sum(jnp.exp(r - m_new[None]), axis=0))
    m_acc[...] = m_new

    # ---- dump per-core partials on the last step of this core's slice ------
    @pl.when(g == pl.num_programs(1) - 1)
    def _():
        pos_out[...] = pos_acc[...][None]
        m_out[...] = m_acc[...][None]
        l_out[...] = l_acc[...][None]


def _rup(x, m):
    return -(-x // m) * m


def _physical_vmem_bytes():
    try:
        info = pltpu.get_tpu_info()
        cap = int(getattr(info, "vmem_capacity_bytes", 0))
        if cap > 0:
            return cap
    except Exception:
        pass
    return 64 << 20  # conservative (v7x-sized) fallback


def _choose_tb(B, E, K, N, NK, in_itemsize, budget_bytes):
    """Rows per grid step, sized from the *padded* (lane-aligned) footprint."""
    lane = 128
    # Streamed, double-buffered inputs: x2 (TB, NK), C (TB, E), x1 (TB, K).
    per_row = 2 * (_rup(NK, lane) + _rup(E, lane) + _rup(K, lane)) * in_itemsize
    # f32 in-kernel intermediates: prod/Pbig (TB, NK), P/pos_prod (TB, K), neg (TB, N).
    per_row += (2 * _rup(NK, lane) + 2 * _rup(K, lane) + 2 * _rup(N, lane)) * 4
    # Resident weights (count double-buffered): Wt (E,K), Wt_big (E,NK), sel (NK,N).
    resident = 2 * (_rup(E, 8) * (_rup(K, lane) + _rup(NK, lane))
                    + _rup(NK, 8) * _rup(N, lane)) * 4
    avail = budget_bytes - resident - (2 << 20)
    tb = max(8, min(avail // max(per_row, 1), 2048))
    tb = (tb // 8) * 8
    if tb >= B:
        return int(B)
    return int(max(tb, 8))


def mine_loss(C, x1, x2, W, *, block_rows=None):
    B, E = C.shape
    _, K = x1.shape
    _, N, _ = x2.shape
    NK = N * K

    # One-time HBM-side preprocessing (all free / tiny):
    Wt = jnp.transpose(W)                                        # (E, K)
    Wt_big = jnp.tile(Wt, (1, N))                                # (E, N*K)
    sel = jnp.kron(jnp.eye(N, dtype=jnp.float32),
                   jnp.ones((K, 1), jnp.float32))                # (N*K, N)
    x2d = x2.reshape(B, NK)                                      # lane-dense

    cap = _physical_vmem_bytes()
    budget = min(int(cap * 0.6), 96 << 20)          # ~38 MiB on v7x, ~76 MiB v5e/v6e
    if block_rows is None:
        TB = _choose_tb(B, E, K, N, NK, jnp.dtype(x2.dtype).itemsize, budget)
    else:
        TB = B if block_rows >= B else max(8, (int(block_rows) // 8) * 8)

    TS = -(-B // TB)                   # number of row tiles
    NC = 2 if TS >= 2 else 1           # leading core axis (v7x megacore split)
    SPC = -(-TS // NC)                 # steps per core
    SUB = 8 if TB % 8 == 0 else TB     # accumulator sublane height

    def row_blk(p, g):
        # Clamp so any "extra" step of the last core re-reads a valid block;
        # its rows are then fully masked out inside the kernel.
        return jnp.minimum(p * SPC + g, TS - 1)

    kernel = functools.partial(_mine_kernel, rows_total=B, steps_per_core=SPC)
    vmem_limit = int(min(cap * 0.9, budget + (24 << 20)))

    pos_p, m_p, l_p = pl.pallas_call(
        kernel,
        out_shape=(jax.ShapeDtypeStruct((NC, SUB, K), jnp.float32),
                   jax.ShapeDtypeStruct((NC, SUB, N), jnp.float32),
                   jax.ShapeDtypeStruct((NC, SUB, N), jnp.float32)),
        grid_spec=pltpu.PrefetchScalarGridSpec(
            num_scalar_prefetch=0,
            grid=(NC, SPC),
            in_specs=[
                pl.BlockSpec((TB, E), lambda p, g: (row_blk(p, g), 0)),   # C tile
                pl.BlockSpec((TB, K), lambda p, g: (row_blk(p, g), 0)),   # x1 tile
                pl.BlockSpec((TB, NK), lambda p, g: (row_blk(p, g), 0)),  # x2 (dense)
                pl.BlockSpec((E, K), lambda p, g: (0, 0)),    # W^T, VMEM resident
                pl.BlockSpec((E, NK), lambda p, g: (0, 0)),   # tiled W^T, resident
                pl.BlockSpec((NK, N), lambda p, g: (0, 0)),   # selection, resident
            ],
            out_specs=[
                pl.BlockSpec((1, SUB, K), lambda p, g: (p, 0, 0)),
                pl.BlockSpec((1, SUB, N), lambda p, g: (p, 0, 0)),
                pl.BlockSpec((1, SUB, N), lambda p, g: (p, 0, 0)),
            ],
            scratch_shapes=[
                pltpu.VMEM((SUB, K), jnp.float32),   # sum(x1 * P) partials
                pltpu.VMEM((SUB, N), jnp.float32),   # running max m
                pltpu.VMEM((SUB, N), jnp.float32),   # running sum exp(neg - m)
            ],
        ),
        compiler_params=pltpu.CompilerParams(
            dimension_semantics=("parallel", "arbitrary"),
            vmem_limit_bytes=vmem_limit,
        ),
    )(C, x1, x2d, Wt, Wt_big, sel)

    # Merge per-(core, sublane, lane) partial LSEs + positive sums (tiny JAX).
    gm = jnp.max(m_p)                                # == max(negative) exactly
    gl = jnp.sum(l_p * jnp.exp(m_p - gm))            # == sum(exp(negative - gm))
    pos = jnp.sum(pos_p)
    return pos / B - jnp.log(gl / (B * N)) - gm


def mine_loss_ref(C, x1, x2, W):
    # Pure-JAX reference mirroring the PyTorch module exactly.
    P = C @ W.T
    positive = jnp.sum(x1 * P, -1)
    negative = jnp.sum(x2 * P[:, None, :], -1)
    expmax = jnp.max(negative)
    return jnp.mean(positive) - jnp.log(jnp.mean(jnp.exp(negative - expmax))) - expmax


if __name__ == "__main__":
    # B deliberately NOT a multiple of the forced tile (or of 8) so the cdiv
    # grid, tail masking, multi-step online LSE and the 2-way core split are
    # all exercised; total data stays well under 1 MiB.
    B, N = 500, 8
    encoding_size = 32   # E
    context_size = 32    # K

    key = jax.random.PRNGKey(0)
    kC, kx1, kx2, kW = jax.random.split(key, 4)
    C = jax.random.normal(kC, (B, encoding_size), dtype=jnp.float32)
    x1 = jax.random.normal(kx1, (B, context_size), dtype=jnp.float32)
    x2 = jax.random.normal(kx2, (B, N, context_size), dtype=jnp.float32)

    # Deterministic Linear weight init (uniform, like torch's default scale).
    bound = 1.0 / (encoding_size ** 0.5)
    W = jax.random.uniform(kW, (context_size, encoding_size),
                           dtype=jnp.float32, minval=-bound, maxval=bound)

    ref = jax.block_until_ready(mine_loss_ref(C, x1, x2, W))

    # Forced small tile: grid (2, 2) with a masked partial tail tile.
    out = jax.block_until_ready(mine_loss(C, x1, x2, W, block_rows=128))
    assert jnp.allclose(out, ref, atol=1e-3, rtol=1e-3), (out, ref)

    # Auto tile sizing (VMEM-budgeted) path.
    out2 = jax.block_until_ready(mine_loss(C, x1, x2, W))
    assert jnp.allclose(out2, ref, atol=1e-3, rtol=1e-3), (out2, ref)

    print("KERNEL_OK")
</pallas_src>

<mosaic_0001>
module attributes {stable_mosaic.version = 11 : i64} {
  func.func @_mine_kernel(%arg0: i32, %arg1: i32, %arg2: memref<128x32xf32, #tpu.memory_space<vmem>>, %arg3: memref<128x32xf32, #tpu.memory_space<vmem>>, %arg4: memref<128x256xf32, #tpu.memory_space<vmem>>, %arg5: memref<32x32xf32, #tpu.memory_space<vmem>>, %arg6: memref<32x256xf32, #tpu.memory_space<vmem>>, %arg7: memref<256x8xf32, #tpu.memory_space<vmem>>, %arg8: memref<1x8x32xf32, #tpu.memory_space<vmem>>, %arg9: memref<1x8x8xf32, #tpu.memory_space<vmem>>, %arg10: memref<1x8x8xf32, #tpu.memory_space<vmem>>, %arg11: memref<8x32xf32, #tpu.memory_space<vmem>>, %arg12: memref<8x8xf32, #tpu.memory_space<vmem>>, %arg13: memref<8x8xf32, #tpu.memory_space<vmem>>) attributes {dimension_semantics = [#tpu.dimension_semantics<parallel>, #tpu.dimension_semantics<arbitrary>], iteration_bounds = array<i64: 2, 2>, scalar_prefetch = 0 : i64, scratch_operands = 3 : i64, tpu.core_type = #tpu.core_type<tc>, window_params = [{transform_indices = @transform_0, window_bounds = array<i64: 128, 32>}, {transform_indices = @transform_1, window_bounds = array<i64: 128, 32>}, {transform_indices = @transform_2, window_bounds = array<i64: 128, 256>}, {pipeline_mode = #tpu.pipeline_mode<synchronous>, transform_indices = @transform_3, window_bounds = array<i64: 32, 32>}, {pipeline_mode = #tpu.pipeline_mode<synchronous>, transform_indices = @transform_4, window_bounds = array<i64: 32, 256>}, {pipeline_mode = #tpu.pipeline_mode<synchronous>, transform_indices = @transform_5, window_bounds = array<i64: 256, 8>}, {transform_indices = @transform_6, window_bounds = array<i64: 1, 8, 32>}, {transform_indices = @transform_7, window_bounds = array<i64: 1, 8, 8>}, {transform_indices = @transform_8, window_bounds = array<i64: 1, 8, 8>}]} {
    %c0_i32 = arith.constant 0 : i32
    %0 = arith.cmpi eq, %arg1, %c0_i32 : i32
    %1 = arith.extui %0 : i1 to i32
    %c0_i32_0 = arith.constant 0 : i32
    %2 = arith.cmpi ne, %1, %c0_i32_0 : i32
    scf.if %2 {
      %cst_32 = arith.constant 0.000000e+00 : f32
      %54 = vector.broadcast %cst_32 : f32 to vector<8x32xf32>
      %c0_33 = arith.constant 0 : index
      %c0_34 = arith.constant 0 : index
      %55 = vector.load %arg11[%c0_33, %c0_34] : memref<8x32xf32, #tpu.memory_space<vmem>>, vector<8x32xf32>
      tpu.vector_store %arg11[%c0_33, %c0_34], %54 {strides = array<i32>} : memref<8x32xf32, #tpu.memory_space<vmem>>, vector<8x32xf32>,
      %cst_35 = arith.constant -1.000000e+30 : f32
      %56 = vector.broadcast %cst_35 : f32 to vector<8x8xf32>
      %c0_36 = arith.constant 0 : index
      %c0_37 = arith.constant 0 : index
      %57 = vector.load %arg12[%c0_36, %c0_37] : memref<8x8xf32, #tpu.memory_space<vmem>>, vector<8x8xf32>
      tpu.vector_store %arg12[%c0_36, %c0_37], %56 {strides = array<i32>} : memref<8x8xf32, #tpu.memory_space<vmem>>, vector<8x8xf32>,
      %cst_38 = arith.constant 0.000000e+00 : f32
      %58 = vector.broadcast %cst_38 : f32 to vector<8x8xf32>
      %c0_39 = arith.constant 0 : index
      %c0_40 = arith.constant 0 : index
      %59 = vector.load %arg13[%c0_39, %c0_40] : memref<8x8xf32, #tpu.memory_space<vmem>>, vector<8x8xf32>
      tpu.vector_store %arg13[%c0_39, %c0_40], %58 {strides = array<i32>} : memref<8x8xf32, #tpu.memory_space<vmem>>, vector<8x8xf32>,
    } else {
    }
    %c2_i32 = arith.constant 2 : i32
    %3 = arith.muli %arg0, %c2_i32 : i32
    %4 = arith.addi %3, %arg1 : i32
    %c128_i32 = arith.constant 128 : i32
    %5 = arith.muli %4, %c128_i32 : i32
    %6 = tpu.iota {dimensions = array<i32: 0>} : vector<128x1xi32>
    %7 = vector.broadcast %5 : i32 to vector<128x1xi32>
    %8 = arith.addi %6, %7 : vector<128x1xi32>
    %c500_i32 = arith.constant 500 : i32
    %9 = vector.broadcast %c500_i32 : i32 to vector<128x1xi32>
    %10 = arith.cmpi slt, %8, %9 : vector<128x1xi32>
    %c0 = arith.constant 0 : index
    %c0_1 = arith.constant 0 : index
    %11 = vector.load %arg2[%c0, %c0_1] : memref<128x32xf32, #tpu.memory_space<vmem>>, vector<128x32xf32>
    %c0_2 = arith.constant 0 : index
    %c0_3 = arith.constant 0 : index
    %12 = vector.load %arg5[%c0_2, %c0_3] : memref<32x32xf32, #tpu.memory_space<vmem>>, vector<32x32xf32>
    %cst = arith.constant dense<0.000000e+00> : vector<128x32xf32>
    %13 = tpu.matmul %11, %12, %cst {dimension_numbers = #tpu.dot_dimension_numbers<[1], [0], [0], [1], [0, 0, 1, 1], [], []>} : vector<128x32xf32>, vector<32x32xf32>, vector<128x32xf32> -> vector<128x32xf32>
    %c0_4 = arith.constant 0 : index
    %c0_5 = arith.constant 0 : index
    %14 = vector.load %arg3[%c0_4, %c0_5] : memref<128x32xf32, #tpu.memory_space<vmem>>, vector<128x32xf32>
    %15 = arith.mulf %14, %13 : vector<128x32xf32>
    %cst_6 = arith.constant 0.000000e+00 : f32
    %16 = vector.shape_cast %10 : vector<128x1xi1> to vector<128x1xi1>
    %17 = vector.broadcast %16 : vector<128x1xi1> to vector<128x32xi1>
    %18 = vector.broadcast %cst_6 : f32 to vector<128x32xf32>
    %19 = arith.select %17, %15, %18 : vector<128x32xi1>, vector<128x32xf32>
    %c0_7 = arith.constant 0 : index
    %c0_8 = arith.constant 0 : index
    %20 = vector.load %arg11[%c0_7, %c0_8] : memref<8x32xf32, #tpu.memory_space<vmem>>, vector<8x32xf32>
    %21 = vector.shape_cast %19 : vector<128x32xf32> to vector<16x8x32xf32>
    %cst_9 = arith.constant dense<0.000000e+00> : vector<8x32xf32>
    %22 = vector.multi_reduction <add>, %21, %cst_9 [0] : vector<16x8x32xf32> to vector<8x32xf32>
    %23 = arith.addf %20, %22 : vector<8x32xf32>
    %c0_10 = arith.constant 0 : index
    %c0_11 = arith.constant 0 : index
    %24 = vector.load %arg11[%c0_10, %c0_11] : memref<8x32xf32, #tpu.memory_space<vmem>>, vector<8x32xf32>
    tpu.vector_store %arg11[%c0_10, %c0_11], %23 {strides = array<i32>} : memref<8x32xf32, #tpu.memory_space<vmem>>, vector<8x32xf32>,
    %c0_12 = arith.constant 0 : index
    %c0_13 = arith.constant 0 : index
    %25 = vector.load %arg6[%c0_12, %c0_13] : memref<32x256xf32, #tpu.memory_space<vmem>>, vector<32x256xf32>
    %cst_14 = arith.constant dense<0.000000e+00> : vector<128x256xf32>
    %26 = tpu.matmul %11, %25, %cst_14 {dimension_numbers = #tpu.dot_dimension_numbers<[1], [0], [0], [1], [0, 0, 1, 1], [], []>} : vector<128x32xf32>, vector<32x256xf32>, vector<128x256xf32> -> vector<128x256xf32>
    %c0_15 = arith.constant 0 : index
    %c0_16 = arith.constant 0 : index
    %27 = vector.load %arg4[%c0_15, %c0_16] : memref<128x256xf32, #tpu.memory_space<vmem>>, vector<128x256xf32>
    %28 = arith.mulf %27, %26 : vector<128x256xf32>
    %c0_17 = arith.constant 0 : index
    %c0_18 = arith.constant 0 : index
    %29 = vector.load %arg7[%c0_17, %c0_18] : memref<256x8xf32, #tpu.memory_space<vmem>>, vector<256x8xf32>
    %cst_19 = arith.constant dense<0.000000e+00> : vector<128x8xf32>
    %30 = tpu.matmul %28, %29, %cst_19 {dimension_numbers = #tpu.dot_dimension_numbers<[1], [0], [0], [1], [0, 0, 1, 1], [], []>} : vector<128x256xf32>, vector<256x8xf32>, vector<128x8xf32> -> vector<128x8xf32>
    %cst_20 = arith.constant -1.000000e+30 : f32
    %31 = vector.shape_cast %10 : vector<128x1xi1> to vector<128x1xi1>
    %32 = vector.broadcast %31 : vector<128x1xi1> to vector<128x8xi1>
    %33 = vector.broadcast %cst_20 : f32 to vector<128x8xf32>
    %34 = arith.select %32, %30, %33 : vector<128x8xi1>, vector<128x8xf32>
    %35 = vector.shape_cast %34 : vector<128x8xf32> to vector<16x8x8xf32>
    %c0_21 = arith.constant 0 : index
    %c0_22 = arith.constant 0 : index
    %36 = vector.load %arg12[%c0_21, %c0_22] : memref<8x8xf32, #tpu.memory_space<vmem>>, vector<8x8xf32>
    %cst_23 = arith.constant dense<0xFF800000> : vector<8x8xf32>
    %37 = vector.multi_reduction <maximumf>, %35, %cst_23 [0] : vector<16x8x8xf32> to vector<8x8xf32>
    %38 = arith.maximumf %36, %37 : vector<8x8xf32>
    %c0_24 = arith.constant 0 : index
    %c0_25 = arith.constant 0 : index
    %39 = vector.load %arg13[%c0_24, %c0_25] : memref<8x8xf32, #tpu.memory_space<vmem>>, vector<8x8xf32>
    %40 = arith.subf %36, %38 : vector<8x8xf32>
    %41 = math.exp %40 : vector<8x8xf32>
    %42 = arith.mulf %39, %41 : vector<8x8xf32>
    %43 = vector.shape_cast %38 : vector<8x8xf32> to vector<1x8x8xf32>
    %44 = vector.broadcast %43 : vector<1x8x8xf32> to vector<16x8x8xf32>
    %45 = arith.subf %35, %44 : vector<16x8x8xf32>
    %46 = math.exp %45 : vector<16x8x8xf32>
    %cst_26 = arith.constant dense<0.000000e+00> : vector<8x8xf32>
    %47 = vector.multi_reduction <add>, %46, %cst_26 [0] : vector<16x8x8xf32> to vector<8x8xf32>
    %48 = arith.addf %42, %47 : vector<8x8xf32>
    %c0_27 = arith.constant 0 : index
    %c0_28 = arith.constant 0 : index
    %49 = vector.load %arg13[%c0_27, %c0_28] : memref<8x8xf32, #tpu.memory_space<vmem>>, vector<8x8xf32>
    tpu.vector_store %arg13[%c0_27, %c0_28], %48 {strides = array<i32>} : memref<8x8xf32, #tpu.memory_space<vmem>>, vector<8x8xf32>,
    %c0_29 = arith.constant 0 : index
    %c0_30 = arith.constant 0 : index
    %50 = vector.load %arg12[%c0_29, %c0_30] : memref<8x8xf32, #tpu.memory_space<vmem>>, vector<8x8xf32>
    tpu.vector_store %arg12[%c0_29, %c0_30], %38 {strides = array<i32>} : memref<8x8xf32, #tpu.memory_space<vmem>>, vector<8x8xf32>,
    %c1_i32 = arith.constant 1 : i32
    %51 = arith.cmpi eq, %arg1, %c1_i32 : i32
    %52 = arith.extui %51 : i1 to i32
    %c0_i32_31 = arith.constant 0 : i32
    %53 = arith.cmpi ne, %52, %c0_i32_31 : i32
    scf.if %53 {
      %c0_32 = arith.constant 0 : index
      %c0_33 = arith.constant 0 : index
      %54 = vector.load %arg11[%c0_32, %c0_33] : memref<8x32xf32, #tpu.memory_space<vmem>>, vector<8x32xf32>
      %55 = vector.shape_cast %54 : vector<8x32xf32> to vector<1x8x32xf32>
      %c0_34 = arith.constant 0 : index
      %c0_35 = arith.constant 0 : index
      %c0_36 = arith.constant 0 : index
      %56 = vector.load %arg8[%c0_34, %c0_35, %c0_36] : memref<1x8x32xf32, #tpu.memory_space<vmem>>, vector<1x8x32xf32>
      tpu.vector_store %arg8[%c0_34, %c0_35, %c0_36], %55 {strides = array<i32>} : memref<1x8x32xf32, #tpu.memory_space<vmem>>, vector<1x8x32xf32>,
      %c0_37 = arith.constant 0 : index
      %c0_38 = arith.constant 0 : index
      %57 = vector.load %arg12[%c0_37, %c0_38] : memref<8x8xf32, #tpu.memory_space<vmem>>, vector<8x8xf32>
      %58 = vector.shape_cast %57 : vector<8x8xf32> to vector<1x8x8xf32>
      %c0_39 = arith.constant 0 : index
      %c0_40 = arith.constant 0 : index
      %c0_41 = arith.constant 0 : index
      %59 = vector.load %arg9[%c0_39, %c0_40, %c0_41] : memref<1x8x8xf32, #tpu.memory_space<vmem>>, vector<1x8x8xf32>
      tpu.vector_store %arg9[%c0_39, %c0_40, %c0_41], %58 {strides = array<i32>} : memref<1x8x8xf32, #tpu.memory_space<vmem>>, vector<1x8x8xf32>,
      %c0_42 = arith.constant 0 : index
      %c0_43 = arith.constant 0 : index
      %60 = vector.load %arg13[%c0_42, %c0_43] : memref<8x8xf32, #tpu.memory_space<vmem>>, vector<8x8xf32>
      %61 = vector.shape_cast %60 : vector<8x8xf32> to vector<1x8x8xf32>
      %c0_44 = arith.constant 0 : index
      %c0_45 = arith.constant 0 : index
      %c0_46 = arith.constant 0 : index
      %62 = vector.load %arg10[%c0_44, %c0_45, %c0_46] : memref<1x8x8xf32, #tpu.memory_space<vmem>>, vector<1x8x8xf32>
      tpu.vector_store %arg10[%c0_44, %c0_45, %c0_46], %61 {strides = array<i32>} : memref<1x8x8xf32, #tpu.memory_space<vmem>>, vector<1x8x8xf32>,
    } else {
    }
    return
  }
  func.func @transform_0(%arg0: i32, %arg1: i32) -> (i32, i32) {
    %c2_i32 = arith.constant 2 : i32
    %0 = arith.muli %arg0, %c2_i32 : i32
    %1 = arith.addi %0, %arg1 : i32
    %c3_i32 = arith.constant 3 : i32
    %2 = arith.minsi %1, %c3_i32 : i32
    %c0_i32 = arith.constant 0 : i32
    %c0_i32_0 = arith.constant 0 : i32
    return %2, %c0_i32 : i32, i32
  }
  func.func @transform_1(%arg0: i32, %arg1: i32) -> (i32, i32) {
    %c2_i32 = arith.constant 2 : i32
    %0 = arith.muli %arg0, %c2_i32 : i32
    %1 = arith.addi %0, %arg1 : i32
    %c3_i32 = arith.constant 3 : i32
    %2 = arith.minsi %1, %c3_i32 : i32
    %c0_i32 = arith.constant 0 : i32
    %c0_i32_0 = arith.constant 0 : i32
    return %2, %c0_i32 : i32, i32
  }
  func.func @transform_2(%arg0: i32, %arg1: i32) -> (i32, i32) {
    %c2_i32 = arith.constant 2 : i32
    %0 = arith.muli %arg0, %c2_i32 : i32
    %1 = arith.addi %0, %arg1 : i32
    %c3_i32 = arith.constant 3 : i32
    %2 = arith.minsi %1, %c3_i32 : i32
    %c0_i32 = arith.constant 0 : i32
    %c0_i32_0 = arith.constant 0 : i32
    return %2, %c0_i32 : i32, i32
  }
  func.func @transform_3(%arg0: i32, %arg1: i32) -> (i32, i32) {
    %c0_i32 = arith.constant 0 : i32
    %c0_i32_0 = arith.constant 0 : i32
    %c0_i32_1 = arith.constant 0 : i32
    return %c0_i32, %c0_i32_0 : i32, i32
  }
  func.func @transform_4(%arg0: i32, %arg1: i32) -> (i32, i32) {
    %c0_i32 = arith.constant 0 : i32
    %c0_i32_0 = arith.constant 0 : i32
    %c0_i32_1 = arith.constant 0 : i32
    return %c0_i32, %c0_i32_0 : i32, i32
  }
  func.func @transform_5(%arg0: i32, %arg1: i32) -> (i32, i32) {
    %c0_i32 = arith.constant 0 : i32
    %c0_i32_0 = arith.constant 0 : i32
    %c0_i32_1 = arith.constant 0 : i32
    return %c0_i32, %c0_i32_0 : i32, i32
  }
  func.func @transform_6(%arg0: i32, %arg1: i32) -> (i32, i32, i32) {
    %c0_i32 = arith.constant 0 : i32
    %c0_i32_0 = arith.constant 0 : i32
    %c0_i32_1 = arith.constant 0 : i32
    return %arg0, %c0_i32, %c0_i32_0 : i32, i32, i32
  }
  func.func @transform_7(%arg0: i32, %arg1: i32) -> (i32, i32, i32) {
    %c0_i32 = arith.constant 0 : i32
    %c0_i32_0 = arith.constant 0 : i32
    %c0_i32_1 = arith.constant 0 : i32
    return %arg0, %c0_i32, %c0_i32_0 : i32, i32, i32
  }
  func.func @transform_8(%arg0: i32, %arg1: i32) -> (i32, i32, i32) {
    %c0_i32 = arith.constant 0 : i32
    %c0_i32_0 = arith.constant 0 : i32
    %c0_i32_1 = arith.constant 0 : i32
    return %arg0, %c0_i32, %c0_i32_0 : i32, i32, i32
  }
}

</mosaic_0001>

<llo_original>
// kernel: tpu_custom_call.1
$region0: #{tpu_custom_call.1}
  #allocation0 [shape = 'u32[]', space=smem, size = 0x4, offset = 0x4, fixed_abs, tag = 'smem constant byte address 0x4 - core index']
  #allocation1 [shape = 'u32[72,128]{1,0:T(1,128)}', space=vmem, size = 0x9000, scoped, tag = 'internal scratch']
  #allocation2 [shape = 'f32[8,32]{1,0:T(8,128)}', space=vmem, size = 0x1000, scoped, tag = 'scratch operand']
  #allocation3 [shape = 'f32[8,8]{1,0:T(8,128)}', space=vmem, size = 0x1000, scoped, tag = 'scratch operand']
  #allocation4 [shape = 'f32[8,8]{1,0:T(8,128)}', space=vmem, size = 0x1000, scoped, tag = 'scratch operand']
  %s0 = inlined_call_operand.vmem [shape: f32[500,32], index: 0, kind: input, shape index: {}]
  %s1 = inlined_call_operand.vmem [shape: f32[500,32], index: 1, kind: input, shape index: {}]
  %s2 = inlined_call_operand.vmem [shape: f32[500,256], index: 2, kind: input, shape index: {}]
  %s3 = inlined_call_operand.vmem [shape: f32[32,32], index: 3, kind: input, shape index: {}]
  %s4 = inlined_call_operand.vmem [shape: f32[32,256], index: 4, kind: input, shape index: {}]
  %s5 = inlined_call_operand.vmem [shape: f32[256,8], index: 5, kind: input, shape index: {}]
  %s6 = inlined_call_operand.hbm [shape: f32[2,8,32], index: 6, kind: output, shape index: {0}]
  %s7 = inlined_call_operand.hbm [shape: f32[2,8,8], index: 7, kind: output, shape index: {1}]
  %s8 = inlined_call_operand.hbm [shape: f32[2,8,8], index: 8, kind: output, shape index: {2}]
  %9 = xla_tuple %s6, %s7, %s8
  %s10 = sld [smem:[#allocation0]]
  $region81: #{tpu_custom_call.1} parent=0
    _
  %s12 = ssub.s32 1, %s10
  %s13 = scalar_select 0, %s12, %s10
  $region1: #{tpu_custom_call.1} parent=0
    #allocation5 [shape = 'u8[8192]{0}', space=vmem, size = 0x2000, scoped, tag = 'output window, operand 0']
    #allocation6 [shape = 's32[2]{0}', space=sflag, size = 0x8, scoped, tag = 'scoped memory for tpu_custom_call.1']
    #allocation7 [shape = 'u8[8192]{0}', space=vmem, size = 0x2000, scoped, tag = 'output window, operand 1']
    #allocation8 [shape = 's32[2]{0}', space=sflag, size = 0x8, scoped, tag = 'scoped memory for tpu_custom_call.1']
    #allocation9 [shape = 'u8[8192]{0}', space=vmem, size = 0x2000, scoped, tag = 'output window, operand 2']
    %14 = vsyncpa [#allocation6], 0
    %s15 = scalar_lea.sflag [#allocation6], 1
    %16 = vsyncpa %s15, 0
    %17 = vsyncpa [#allocation8], 0
    %s18 = scalar_lea.sflag [#allocation8], 1
    %19 = vsyncpa %s18, 0
    loop: start=0, step=1, limit=6
    $region2: #{tpu_custom_call.1} parent=1 // loop_pre_header
      _
    $region3: #{tpu_custom_call.1} parent=1 // loop_header
      %s21 = sphi 0, %s25
      %p22 = scmp.ge.s32.totalorder %s21, 6
      %s28 = sphi 0, %s40
      %s29 = sphi 0, %s36
      %s30 = sphi 0, %s28
      %s31 = sphi 0, %s29
      %s32 = sphi 0, %s30
      %s33 = sphi 0, %s31
      %s51 = sphi 0, %s53
      %s54 = sphi 0, %s51
      %s55 = sphi 0, %s54
      %s71 = sphi 0, %s55
      %s85 = sphi 0, %s87
      %s88 = sphi 0, %s85
      %s89 = sphi 0, %s88
      %s105 = sphi 0, %s89
      %s119 = sphi 0, %s121
      %s122 = sphi 0, %s119
      %s123 = sphi 0, %s122
      %s139 = sphi 0, %s123
      %s143 = sphi 0, %s143
      %s145 = sphi 0, %s143
      %s146 = sphi 0, %s145
      %s160 = sphi 0, %s146
      %s164 = sphi 0, %s164
      %s166 = sphi 0, %s164
      %s167 = sphi 0, %s166
      %s181 = sphi 0, %s167
      %s185 = sphi 0, %s185
      %s187 = sphi 0, %s185
      %s188 = sphi 0, %s187
      %s202 = sphi 0, %s188
      %s208 = sphi 0, %s210
      %s211 = sphi 0, %s208
      %s212 = sphi 0, %s211
      %s228 = sphi 0, %s212
      %s234 = sphi 0, %s236
      %s237 = sphi 0, %s234
      %s238 = sphi 0, %s237
      %s254 = sphi 0, %s238
      %s260 = sphi 0, %s262
      %s263 = sphi 0, %s260
      %s264 = sphi 0, %s263
      %s280 = sphi 0, %s264
    $region4: #{tpu_custom_call.1} parent=1 // loop_header_branch
      %24 = sbr.rel (%p22) target = $region8
    $region5: #{tpu_custom_call.1} parent=1 // loop_body
      %s26 = ssub.s32 %s21, 1
      %s27 = ssub.s32 %s21, 2
      %s34 = sadd.s32 1, %s29
      %p35 = scmp.ge.s32.totalorder %s34, 2
      %s36 = scalar_select %p35, 0, %s34
      %s37 = sadd.s32 1, %s28
      %s38 = scalar_select %p35, %s37, %s28
      %p39 = scmp.ge.s32.totalorder %s38, 2
      %s40 = scalar_select %p39, 0, %s38
      %s41 = smul.u32 %s28, 2
      %s42 = sadd.s32 %s41, %s29
      %p43 = scmp.lt.s32.totalorder %s42, 3
      %s44 = scalar_select %p43, %s42, 3
      %s45 = smul.u32 %s40, 2
      %s46 = sadd.s32 %s45, %s36
      %p47 = scmp.lt.s32.totalorder %s46, 3
      %s48 = scalar_select %p47, %s46, 3
      %s49 = ssub.s32 %s44, %s48
      %p50 = scmp.eq.s32.totalorder %s49, 0
      %s52 = sadd.s32 %s51, 1
      %s53 = scalar_select %p50, %s51, %s52
      %p56 = pneg %p50
      %p57 = scmp.eq.s32.totalorder %s21, 3
      %p58 = por %p56, %p57
      %p59 = scmp.ne.s32.totalorder %s51, %s54
      %p60 = scmp.eq.s32.totalorder %s21, 0
      %p61 = por %p59, %p60
      %p62 = scmp.ne.s32.totalorder %s51, %s54
      %p63 = scmp.eq.s32.totalorder %s26, 3
      %p64 = por %p62, %p63
      %p65 = scmp.ne.s32.totalorder %s54, %s55
      %p66 = scmp.eq.s32.totalorder %s26, 0
      %p67 = por %p65, %p66
      %p68 = scmp.ne.s32.totalorder %s54, %s55
      %p69 = scmp.eq.s32.totalorder %s27, 3
      %p70 = por %p68, %p69
      %p72 = scmp.ne.s32.totalorder %s55, %s71
      %p73 = scmp.eq.s32.totalorder %s27, 0
      %p74 = por %p72, %p73
      %s75 = smul.u32 %s28, 2
      %s76 = sadd.s32 %s75, %s29
      %p77 = scmp.lt.s32.totalorder %s76, 3
      %s78 = scalar_select %p77, %s76, 3
      %s79 = smul.u32 %s40, 2
      %s80 = sadd.s32 %s79, %s36
      %p81 = scmp.lt.s32.totalorder %s80, 3
      %s82 = scalar_select %p81, %s80, 3
      %s83 = ssub.s32 %s78, %s82
      %p84 = scmp.eq.s32.totalorder %s83, 0
      %s86 = sadd.s32 %s85, 1
      %s87 = scalar_select %p84, %s85, %s86
      %p90 = pneg %p84
      %p91 = scmp.eq.s32.totalorder %s21, 3
      %p92 = por %p90, %p91
      %p93 = scmp.ne.s32.totalorder %s85, %s88
      %p94 = scmp.eq.s32.totalorder %s21, 0
      %p95 = por %p93, %p94
      %p96 = scmp.ne.s32.totalorder %s85, %s88
      %p97 = scmp.eq.s32.totalorder %s26, 3
      %p98 = por %p96, %p97
      %p99 = scmp.ne.s32.totalorder %s88, %s89
      %p100 = scmp.eq.s32.totalorder %s26, 0
      %p101 = por %p99, %p100
      %p102 = scmp.ne.s32.totalorder %s88, %s89
      %p103 = scmp.eq.s32.totalorder %s27, 3
      %p104 = por %p102, %p103
      %p106 = scmp.ne.s32.totalorder %s89, %s105
      %p107 = scmp.eq.s32.totalorder %s27, 0
      %p108 = por %p106, %p107
      %s109 = smul.u32 %s28, 2
      %s110 = sadd.s32 %s109, %s29
      %p111 = scmp.lt.s32.totalorder %s110, 3
      %s112 = scalar_select %p111, %s110, 3
      %s113 = smul.u32 %s40, 2
      %s114 = sadd.s32 %s113, %s36
      %p115 = scmp.lt.s32.totalorder %s114, 3
      %s116 = scalar_select %p115, %s114, 3
      %s117 = ssub.s32 %s112, %s116
      %p118 = scmp.eq.s32.totalorder %s117, 0
      %s120 = sadd.s32 %s119, 1
      %s121 = scalar_select %p118, %s119, %s120
      %p124 = pneg %p118
      %p125 = scmp.eq.s32.totalorder %s21, 3
      %p126 = por %p124, %p125
      %p127 = scmp.ne.s32.totalorder %s119, %s122
      %p128 = scmp.eq.s32.totalorder %s21, 0
      %p129 = por %p127, %p128
      %p130 = scmp.ne.s32.totalorder %s119, %s122
      %p131 = scmp.eq.s32.totalorder %s26, 3
      %p132 = por %p130, %p131
      %p133 = scmp.ne.s32.totalorder %s122, %s123
      %p134 = scmp.eq.s32.totalorder %s26, 0
      %p135 = por %p133, %p134
      %p136 = scmp.ne.s32.totalorder %s122, %s123
      %p137 = scmp.eq.s32.totalorder %s27, 3
      %p138 = por %p136, %p137
      %p140 = scmp.ne.s32.totalorder %s123, %s139
      %p141 = scmp.eq.s32.totalorder %s27, 0
      %p142 = por %p140, %p141
      %s144 = sadd.s32 %s143, 1
      %p147 = scmp.eq.s32.totalorder %s21, 3
      %p148 = scmp.ne.s32.totalorder %s143, %s145
      %p149 = scmp.eq.s32.totalorder %s21, 0
      %p150 = por %p148, %p149
      %p151 = scmp.ne.s32.totalorder %s143, %s145
      %p152 = scmp.eq.s32.totalorder %s26, 3
      %p153 = por %p151, %p152
      %p154 = scmp.ne.s32.totalorder %s145, %s146
      %p155 = scmp.eq.s32.totalorder %s26, 0
      %p156 = por %p154, %p155
      %p157 = scmp.ne.s32.totalorder %s145, %s146
      %p158 = scmp.eq.s32.totalorder %s27, 3
      %p159 = por %p157, %p158
      %p161 = scmp.ne.s32.totalorder %s146, %s160
      %p162 = scmp.eq.s32.totalorder %s27, 0
      %p163 = por %p161, %p162
      %s165 = sadd.s32 %s164, 1
      %p168 = scmp.eq.s32.totalorder %s21, 3
      %p169 = scmp.ne.s32.totalorder %s164, %s166
      %p170 = scmp.eq.s32.totalorder %s21, 0
      %p171 = por %p169, %p170
      %p172 = scmp.ne.s32.totalorder %s164, %s166
      %p173 = scmp.eq.s32.totalorder %s26, 3
      %p174 = por %p172, %p173
      %p175 = scmp.ne.s32.totalorder %s166, %s167
      %p176 = scmp.eq.s32.totalorder %s26, 0
      %p177 = por %p175, %p176
      %p178 = scmp.ne.s32.totalorder %s166, %s167
      %p179 = scmp.eq.s32.totalorder %s27, 3
      %p180 = por %p178, %p179
      %p182 = scmp.ne.s32.totalorder %s167, %s181
      %p183 = scmp.eq.s32.totalorder %s27, 0
      %p184 = por %p182, %p183
      %s186 = sadd.s32 %s185, 1
      %p189 = scmp.eq.s32.totalorder %s21, 3
      %p190 = scmp.ne.s32.totalorder %s185, %s187
      %p191 = scmp.eq.s32.totalorder %s21, 0
      %p192 = por %p190, %p191
      %p193 = scmp.ne.s32.totalorder %s185, %s187
      %p194 = scmp.eq.s32.totalorder %s26, 3
      %p195 = por %p193, %p194
      %p196 = scmp.ne.s32.totalorder %s187, %s188
      %p197 = scmp.eq.s32.totalorder %s26, 0
      %p198 = por %p196, %p197
      %p199 = scmp.ne.s32.totalorder %s187, %s188
      %p200 = scmp.eq.s32.totalorder %s27, 3
      %p201 = por %p199, %p200
      %p203 = scmp.ne.s32.totalorder %s188, %s202
      %p204 = scmp.eq.s32.totalorder %s27, 0
      %p205 = por %p203, %p204
      %s206 = ssub.s32 %s28, %s40
      %p207 = scmp.eq.s32.totalorder %s206, 0
      %s209 = sadd.s32 %s208, 1
      %s210 = scalar_select %p207, %s208, %s209
      %p213 = pneg %p207
      %p214 = scmp.eq.s32.totalorder %s21, 3
      %p215 = por %p213, %p214
      %p216 = scmp.ne.s32.totalorder %s208, %s211
      %p217 = scmp.eq.s32.totalorder %s21, 0
      %p218 = por %p216, %p217
      %p219 = scmp.ne.s32.totalorder %s208, %s211
      %p220 = scmp.eq.s32.totalorder %s26, 3
      %p221 = por %p219, %p220
      %p222 = scmp.ne.s32.totalorder %s211, %s212
      %p223 = scmp.eq.s32.totalorder %s26, 0
      %p224 = por %p222, %p223
      %p225 = scmp.ne.s32.totalorder %s211, %s212
      %p226 = scmp.eq.s32.totalorder %s27, 3
      %p227 = por %p225, %p226
      %p229 = scmp.ne.s32.totalorder %s212, %s228
      %p230 = scmp.eq.s32.totalorder %s27, 0
      %p231 = por %p229, %p230
      %s232 = ssub.s32 %s28, %s40
      %p233 = scmp.eq.s32.totalorder %s232, 0
      %s235 = sadd.s32 %s234, 1
      %s236 = scalar_select %p233, %s234, %s235
      %p239 = pneg %p233
      %p240 = scmp.eq.s32.totalorder %s21, 3
      %p241 = por %p239, %p240
      %p242 = scmp.ne.s32.totalorder %s234, %s237
      %p243 = scmp.eq.s32.totalorder %s21, 0
      %p244 = por %p242, %p243
      %p245 = scmp.ne.s32.totalorder %s234, %s237
      %p246 = scmp.eq.s32.totalorder %s26, 3
      %p247 = por %p245, %p246
      %p248 = scmp.ne.s32.totalorder %s237, %s238
      %p249 = scmp.eq.s32.totalorder %s26, 0
      %p250 = por %p248, %p249
      %p251 = scmp.ne.s32.totalorder %s237, %s238
      %p252 = scmp.eq.s32.totalorder %s27, 3
      %p253 = por %p251, %p252
      %p255 = scmp.ne.s32.totalorder %s238, %s254
      %p256 = scmp.eq.s32.totalorder %s27, 0
      %p257 = por %p255, %p256
      %s258 = ssub.s32 %s28, %s40
      %p259 = scmp.eq.s32.totalorder %s258, 0
      %s261 = sadd.s32 %s260, 1
      %s262 = scalar_select %p259, %s260, %s261
      %p265 = pneg %p259
      %p266 = scmp.eq.s32.totalorder %s21, 3
      %p267 = por %p265, %p266
      %p268 = scmp.ne.s32.totalorder %s260, %s263
      %p269 = scmp.eq.s32.totalorder %s21, 0
      %p270 = por %p268, %p269
      %p271 = scmp.ne.s32.totalorder %s260, %s263
      %p272 = scmp.eq.s32.totalorder %s26, 3
      %p273 = por %p271, %p272
      %p274 = scmp.ne.s32.totalorder %s263, %s264
      %p275 = scmp.eq.s32.totalorder %s26, 0
      %p276 = por %p274, %p275
      %p277 = scmp.ne.s32.totalorder %s263, %s264
      %p278 = scmp.eq.s32.totalorder %s27, 3
      %p279 = por %p277, %p278
      %p281 = scmp.ne.s32.totalorder %s264, %s280
      %p282 = scmp.eq.s32.totalorder %s27, 0
      %p283 = por %p281, %p282
      %p284 = scmp.le.s32.totalorder 1, %s21
      %p285 = scmp.lt.s32.totalorder %s21, 5
      %p286 = pnand %p284, %p285
      %p287 = pneg %p286
      // Predicated region
      $region9: #{tpu_custom_call.1} parent=5 // pred_check
        _
      $region10: #{tpu_custom_call.1} parent=5 // pred_check_branch
        %289 = sbr.rel (%p286) target = $region12
      $region11: #{tpu_custom_call.1} parent=5 // pred_region
        %s290 = ssub.s32 %s21, 1
        // Predicated region
        $region13: #{tpu_custom_call.1} parent=11 // pred_check
          %p291 = pneg %p156
        $region14: #{tpu_custom_call.1} parent=11 // pred_check_branch
          %293 = sbr.rel (%p291) target = $region16
        $region15: #{tpu_custom_call.1} parent=11 // pred_region
          _
        $region16: #{tpu_custom_call.1} parent=11 // pred_fallthru
          _
        // Predicated region
        $region17: #{tpu_custom_call.1} parent=11 // pred_check
          %p294 = pneg %p177
        $region18: #{tpu_custom_call.1} parent=11 // pred_check_branch
          %296 = sbr.rel (%p294) target = $region20
        $region19: #{tpu_custom_call.1} parent=11 // pred_region
          _
        $region20: #{tpu_custom_call.1} parent=11 // pred_fallthru
          _
        // Predicated region
        $region21: #{tpu_custom_call.1} parent=11 // pred_check
          %p297 = pneg %p198
        $region22: #{tpu_custom_call.1} parent=11 // pred_check_branch
          %299 = sbr.rel (%p297) target = $region24
        $region23: #{tpu_custom_call.1} parent=11 // pred_region
          _
        $region24: #{tpu_custom_call.1} parent=11 // pred_fallthru
          _
      $region12: #{tpu_custom_call.1} parent=5 // pred_fallthru
        _
      %p300 = scmp.lt.s32.totalorder %s21, 4
      // Predicated region
      $region25: #{tpu_custom_call.1} parent=5 // pred_check
        %p301 = pneg %p300
      $region26: #{tpu_custom_call.1} parent=5 // pred_check_branch
        %303 = sbr.rel (%p301) target = $region28
      $region27: #{tpu_custom_call.1} parent=5 // pred_region
        // Predicated region
        $region29: #{tpu_custom_call.1} parent=27 // pred_check
          %p304 = pneg %p61
        $region30: #{tpu_custom_call.1} parent=27 // pred_check_branch
          %306 = sbr.rel (%p304) target = $region32
        $region31: #{tpu_custom_call.1} parent=27 // pred_region
          %s307 = smul.u32 %s28, 2
          %s308 = sadd.s32 %s307, %s29
          %p309 = scmp.lt.s32.totalorder %s308, 3
          %s310 = scalar_select %p309, %s308, 3
          %s311 = smul.u32 16, %s310
          %s312 = ssub.s32 63, %s311
          %p313 = scmp.lt.s32.totalorder %s312, 16
          %s314 = scalar_select %p313, %s312, 16
          %s315 = smul.u32 8, %s314
          %p316 = scmp.lt.s32.totalorder %s311, 62
          %s317 = scalar_select %p316, %s311, 62
          %s318 = smul.addr %s317, 8
          %s319 = scalar_lea.vmem %s0, %s318
          %s320 = smul.u32 %s28, 2
          %s321 = sadd.s32 %s320, %s29
          %p322 = scmp.lt.s32.totalorder %s321, 3
          %s323 = scalar_select %p322, %s321, 3
          %s324 = smul.u32 16, %s323
          %s325 = ssub.s32 63, %s324
          %p326 = scmp.lt.s32.totalorder %s325, 16
          %s327 = scalar_select %p326, %s325, 16
          %s328 = smul.u32 8, %s327
        $region32: #{tpu_custom_call.1} parent=27 // pred_fallthru
          _
        // Predicated region
        $region33: #{tpu_custom_call.1} parent=27 // pred_check
          %p329 = pneg %p95
        $region34: #{tpu_custom_call.1} parent=27 // pred_check_branch
          %331 = sbr.rel (%p329) target = $region36
        $region35: #{tpu_custom_call.1} parent=27 // pred_region
          %s332 = smul.u32 %s28, 2
          %s333 = sadd.s32 %s332, %s29
          %p334 = scmp.lt.s32.totalorder %s333, 3
          %s335 = scalar_select %p334, %s333, 3
          %s336 = smul.u32 16, %s335
          %s337 = ssub.s32 63, %s336
          %p338 = scmp.lt.s32.totalorder %s337, 16
          %s339 = scalar_select %p338, %s337, 16
          %s340 = smul.u32 8, %s339
          %p341 = scmp.lt.s32.totalorder %s336, 62
          %s342 = scalar_select %p341, %s336, 62
          %s343 = smul.addr %s342, 8
          %s344 = scalar_lea.vmem %s1, %s343
          %s345 = smul.u32 %s28, 2
          %s346 = sadd.s32 %s345, %s29
          %p347 = scmp.lt.s32.totalorder %s346, 3
          %s348 = scalar_select %p347, %s346, 3
          %s349 = smul.u32 16, %s348
          %s350 = ssub.s32 63, %s349
          %p351 = scmp.lt.s32.totalorder %s350, 16
          %s352 = scalar_select %p351, %s350, 16
          %s353 = smul.u32 8, %s352
        $region36: #{tpu_custom_call.1} parent=27 // pred_fallthru
          _
        // Predicated region
        $region37: #{tpu_custom_call.1} parent=27 // pred_check
          %p354 = pneg %p129
        $region38: #{tpu_custom_call.1} parent=27 // pred_check_branch
          %356 = sbr.rel (%p354) target = $region40
        $region39: #{tpu_custom_call.1} parent=27 // pred_region
          %s357 = smul.u32 %s28, 2
          %s358 = sadd.s32 %s357, %s29
          %p359 = scmp.lt.s32.totalorder %s358, 3
          %s360 = scalar_select %p359, %s358, 3
          %s361 = smul.u32 16, %s360
          %s362 = ssub.s32 63, %s361
          %p363 = scmp.lt.s32.totalorder %s362, 16
          %s364 = scalar_select %p363, %s362, 16
          %s365 = smul.u32 8, %s364
          %s366 = smul.u32 %s365, 2
          %p367 = scmp.lt.s32.totalorder %s361, 62
          %s368 = scalar_select %p367, %s361, 62
          %s369 = smul.addr %s368, 2
          %s370 = smul.addr %s369, 8
          %s371 = scalar_lea.vmem %s2, %s370
          %s372 = smul.u32 %s28, 2
          %s373 = sadd.s32 %s372, %s29
          %p374 = scmp.lt.s32.totalorder %s373, 3
          %s375 = scalar_select %p374, %s373, 3
          %s376 = smul.u32 16, %s375
          %s377 = ssub.s32 63, %s376
          %p378 = scmp.lt.s32.totalorder %s377, 16
          %s379 = scalar_select %p378, %s377, 16
          %s380 = smul.u32 8, %s379
          %s381 = smul.u32 %s380, 2
        $region40: #{tpu_custom_call.1} parent=27 // pred_fallthru
          _
      $region28: #{tpu_custom_call.1} parent=5 // pred_fallthru
        _
      %p382 = scmp.le.s32.totalorder 1, %s21
      %p383 = scmp.lt.s32.totalorder %s21, 5
      %p384 = pnand %p382, %p383
      %p385 = pneg %p384
      // Predicated region
      $region41: #{tpu_custom_call.1} parent=5 // pred_check
        _
      $region42: #{tpu_custom_call.1} parent=5 // pred_check_branch
        %387 = sbr.rel (%p384) target = $region44
      $region43: #{tpu_custom_call.1} parent=5 // pred_region
        %s388 = ssub.s32 %s21, 1
        %s389 = smul.u32 %s30, 2
        %s390 = sadd.s32 %s389, %s31
        %p391 = scmp.lt.s32.totalorder %s390, 3
        %s392 = scalar_select %p391, %s390, 3
        %s393 = smul.u32 16, %s392
        %s394 = ssub.s32 63, %s393
        %p395 = scmp.lt.s32.totalorder %s394, 16
        %s396 = scalar_select %p395, %s394, 16
        %s397 = smul.u32 8, %s396
        %p398 = scmp.lt.s32.totalorder %s393, 62
        %s399 = scalar_select %p398, %s393, 62
        %s400 = smul.addr %s399, 8
        %s401 = scalar_lea.vmem %s0, %s400
        %p402 = pneg %p67
        %p403 = pneg %p64
        %s404 = smul.u32 %s30, 2
        %s405 = sadd.s32 %s404, %s31
        %p406 = scmp.lt.s32.totalorder %s405, 3
        %s407 = scalar_select %p406, %s405, 3
        %s408 = smul.u32 16, %s407
        %s409 = ssub.s32 63, %s408
        %p410 = scmp.lt.s32.totalorder %s409, 16
        %s411 = scalar_select %p410, %s409, 16
        %s412 = smul.u32 8, %s411
        %p413 = scmp.lt.s32.totalorder %s408, 62
        %s414 = scalar_select %p413, %s408, 62
        %s415 = smul.addr %s414, 8
        %s416 = scalar_lea.vmem %s1, %s415
        %p417 = pneg %p101
        %p418 = pneg %p98
        %s419 = smul.u32 %s30, 2
        %s420 = sadd.s32 %s419, %s31
        %p421 = scmp.lt.s32.totalorder %s420, 3
        %s422 = scalar_select %p421, %s420, 3
        %s423 = smul.u32 16, %s422
        %s424 = ssub.s32 63, %s423
        %p425 = scmp.lt.s32.totalorder %s424, 16
        %s426 = scalar_select %p425, %s424, 16
        %s427 = smul.u32 8, %s426
        %s428 = smul.u32 %s427, 2
        %p429 = scmp.lt.s32.totalorder %s423, 62
        %s430 = scalar_select %p429, %s423, 62
        %s431 = smul.addr %s430, 2
        %s432 = smul.addr %s431, 8
        %s433 = scalar_lea.vmem %s2, %s432
        %p434 = pneg %p135
        %p435 = pneg %p132
        %p436 = pneg %p156
        %p437 = pneg %p153
        %p438 = pneg %p177
        %p439 = pneg %p174
        %p440 = pneg %p198
        %p441 = pneg %p195
        %p442 = pneg %p224
        %p443 = pneg %p221
        %s444 = sand.u32 %s211, 1
        %s445 = scalar_lea.sflag [#allocation6], %s444
        %s446 = sand.u32 %s211, 1
        %s447 = smul.addr %s446, 8
        %s448 = scalar_lea.vmem [#allocation5], %s447
        %p449 = pneg %p250
        %p450 = pneg %p247
        %s451 = sand.u32 %s26, 1
        %s452 = scalar_lea.sflag [#allocation8], %s451
        %s453 = sand.u32 %s237, 1
        %s454 = smul.addr %s453, 8
        %s455 = scalar_lea.vmem [#allocation7], %s454
        %p456 = pneg %p276
        %p457 = pneg %p273
        %s458 = sand.u32 %s26, 1
        %s459 = scalar_lea.sflag [#allocation8], %s458
        %s460 = sand.u32 %s263, 1
        %s461 = smul.addr %s460, 8
        %s462 = scalar_lea.vmem [#allocation9], %s461
        %s463 = smul.u32 %s30, 2
        %s464 = sadd.s32 %s463, %s31
        %p465 = scmp.lt.s32.totalorder %s464, 3
        %s466 = scalar_select %p465, %s464, 3
        %s467 = smul.u32 16, %s466
        %s468 = ssub.s32 63, %s467
        %p469 = scmp.lt.s32.totalorder %s468, 16
        %s470 = scalar_select %p469, %s468, 16
        %s471 = smul.u32 8, %s470
        %p472 = scmp.lt.s32.totalorder %s467, 62
        %s473 = scalar_select %p472, %s467, 62
        %s474 = smul.addr %s473, 8
        %s475 = scalar_lea.vmem %s0, %s474
        %s476 = smul.u32 %s30, 2
        %s477 = sadd.s32 %s476, %s31
        %p478 = scmp.lt.s32.totalorder %s477, 3
        %s479 = scalar_select %p478, %s477, 3
        %s480 = smul.u32 16, %s479
        %s481 = ssub.s32 63, %s480
        %p482 = scmp.lt.s32.totalorder %s481, 16
        %s483 = scalar_select %p482, %s481, 16
        %s484 = smul.u32 8, %s483
        %s485 = smul.u32 %s30, 2
        %s486 = sadd.s32 %s485, %s31
        %p487 = scmp.lt.s32.totalorder %s486, 3
        %s488 = scalar_select %p487, %s486, 3
        %s489 = smul.u32 16, %s488
        %s490 = ssub.s32 63, %s489
        %p491 = scmp.lt.s32.totalorder %s490, 16
        %s492 = scalar_select %p491, %s490, 16
        %s493 = smul.u32 8, %s492
        %p494 = scmp.lt.s32.totalorder %s489, 62
        %s495 = scalar_select %p494, %s489, 62
        %s496 = smul.addr %s495, 8
        %s497 = scalar_lea.vmem %s1, %s496
        %s498 = smul.u32 %s30, 2
        %s499 = sadd.s32 %s498, %s31
        %p500 = scmp.lt.s32.totalorder %s499, 3
        %s501 = scalar_select %p500, %s499, 3
        %s502 = smul.u32 16, %s501
        %s503 = ssub.s32 63, %s502
        %p504 = scmp.lt.s32.totalorder %s503, 16
        %s505 = scalar_select %p504, %s503, 16
        %s506 = smul.u32 8, %s505
        %s507 = smul.u32 %s30, 2
        %s508 = sadd.s32 %s507, %s31
        %p509 = scmp.lt.s32.totalorder %s508, 3
        %s510 = scalar_select %p509, %s508, 3
        %s511 = smul.u32 16, %s510
        %s512 = ssub.s32 63, %s511
        %p513 = scmp.lt.s32.totalorder %s512, 16
        %s514 = scalar_select %p513, %s512, 16
        %s515 = smul.u32 8, %s514
        %s516 = smul.u32 %s515, 2
        %p517 = scmp.lt.s32.totalorder %s511, 62
        %s518 = scalar_select %p517, %s511, 62
        %s519 = smul.addr %s518, 2
        %s520 = smul.addr %s519, 8
        %s521 = scalar_lea.vmem %s2, %s520
        %s522 = smul.u32 %s30, 2
        %s523 = sadd.s32 %s522, %s31
        %p524 = scmp.lt.s32.totalorder %s523, 3
        %s525 = scalar_select %p524, %s523, 3
        %s526 = smul.u32 16, %s525
        %s527 = ssub.s32 63, %s526
        %p528 = scmp.lt.s32.totalorder %s527, 16
        %s529 = scalar_select %p528, %s527, 16
        %s530 = smul.u32 8, %s529
        %s531 = smul.u32 %s530, 2
        %p532 = scmp.eq.s32.totalorder %s31, 0
        // Predicated region
        $region45: #{tpu_custom_call.1} parent=43 // pred_check
          %p533 = pneg %p532
        $region46: #{tpu_custom_call.1} parent=43 // pred_check_branch
          %535 = sbr.rel (%p533) target = $region48
        $region47: #{tpu_custom_call.1} parent=43 // pred_region
          %vm536 = vcmask 261120
          %537 = vst.msk [vmem:[#allocation2] sm:$0xff] %vm536, 0.0
          %vm538 = vcmask 64512
          %539 = vst.msk [vmem:[#allocation3] sm:$0xff] %vm538, -1e+30
          %540 = vst.msk [vmem:[#allocation4] sm:$0xff] %vm538, 0.0
        $region48: #{tpu_custom_call.1} parent=43 // pred_fallthru
          _
        %s541 = smul.u32 %s30, 2
        %s542 = sadd.s32 %s541, %s31
        %s543 = smul.u32 %s542, 128
        %v544 = vlaneseq
        %v545 = vshrl.u32 %v544, 7
        %v546 = vadd.s32 %v545, 8
        %v547 = vadd.s32 %v545, 16
        %v548 = vadd.s32 %v545, 24
        %v549 = vadd.s32 %v545, 32
        %v550 = vadd.s32 %v545, 40
        %v551 = vadd.s32 %v545, 48
        %v552 = vadd.s32 %v545, 56
        %v553 = vadd.s32 %v545, 64
        %v554 = vadd.s32 %v545, 72
        %v555 = vadd.s32 %v545, 80
        %v556 = vadd.s32 %v545, 88
        %v557 = vadd.s32 %v545, 96
        %v558 = vadd.s32 %v545, 104
        %v559 = vadd.s32 %v545, 112
        %v560 = vadd.s32 %v545, 120
        %v561 = vstv %s543
        %v562 = vadd.s32 %v545, %v561
        %v563 = vadd.s32 %v546, %v561
        %v564 = vadd.s32 %v547, %v561
        %v565 = vadd.s32 %v548, %v561
        %v566 = vadd.s32 %v549, %v561
        %v567 = vadd.s32 %v550, %v561
        %v568 = vadd.s32 %v551, %v561
        %v569 = vadd.s32 %v552, %v561
        %v570 = vadd.s32 %v553, %v561
        %v571 = vadd.s32 %v554, %v561
        %v572 = vadd.s32 %v555, %v561
        %v573 = vadd.s32 %v556, %v561
        %v574 = vadd.s32 %v557, %v561
        %v575 = vadd.s32 %v558, %v561
        %v576 = vadd.s32 %v559, %v561
        %v577 = vadd.s32 %v560, %v561
        %vm578 = vcmp.lt.s32.totalorder %v562, 500
        %vm579 = vcmp.lt.s32.totalorder %v563, 500
        %vm580 = vcmp.lt.s32.totalorder %v564, 500
        %vm581 = vcmp.lt.s32.totalorder %v565, 500
        %vm582 = vcmp.lt.s32.totalorder %v566, 500
        %vm583 = vcmp.lt.s32.totalorder %v567, 500
        %vm584 = vcmp.lt.s32.totalorder %v568, 500
        %vm585 = vcmp.lt.s32.totalorder %v569, 500
        %vm586 = vcmp.lt.s32.totalorder %v570, 500
        %vm587 = vcmp.lt.s32.totalorder %v571, 500
        %vm588 = vcmp.lt.s32.totalorder %v572, 500
        %vm589 = vcmp.lt.s32.totalorder %v573, 500
        %vm590 = vcmp.lt.s32.totalorder %v574, 500
        %vm591 = vcmp.lt.s32.totalorder %v575, 500
        %vm592 = vcmp.lt.s32.totalorder %v576, 500
        %vm593 = vcmp.lt.s32.totalorder %v577, 500
        %v594 = vld [vmem:[%s475] sm:$0xff]
        %v595 = vld [vmem:[%s475 + $0x8] sm:$0xff]
        %v596 = vld [vmem:[%s475 + $0x10] sm:$0xff]
        %v597 = vld [vmem:[%s475 + $0x18] sm:$0xff]
        %v598 = vld [vmem:[%s475 + $0x20] sm:$0xff]
        %v599 = vld [vmem:[%s475 + $0x28] sm:$0xff]
        %v600 = vld [vmem:[%s475 + $0x30] sm:$0xff]
        %v601 = vld [vmem:[%s475 + $0x38] sm:$0xff]
        %v602 = vld [vmem:[%s475 + $0x40] sm:$0xff]
        %v603 = vld [vmem:[%s475 + $0x48] sm:$0xff]
        %v604 = vld [vmem:[%s475 + $0x50] sm:$0xff]
        %v605 = vld [vmem:[%s475 + $0x58] sm:$0xff]
        %v606 = vld [vmem:[%s475 + $0x60] sm:$0xff]
        %v607 = vld [vmem:[%s475 + $0x68] sm:$0xff]
        %v608 = vld [vmem:[%s475 + $0x70] sm:$0xff]
        %v609 = vld [vmem:[%s475 + $0x78] sm:$0xff]
        %v610 = vld [vmem:[%s3] sm:$0xff]
        %v611 = vld [vmem:[%s3 + $0x8] sm:$0xff]
        %v612 = vld [vmem:[%s3 + $0x10] sm:$0xff]
        %v613 = vld [vmem:[%s3 + $0x18] sm:$0xff]
        %vm614 = vcmask 261120
        %v616 = vsel %vm614, %v594, 0
        %v619 = vsel %vm614, %v595, 0
        %v622 = vsel %vm614, %v596, 0
        %v625 = vsel %vm614, %v597, 0
        %v628 = vsel %vm614, %v598, 0
        %v631 = vsel %vm614, %v599, 0
        %v634 = vsel %vm614, %v600, 0
        %v637 = vsel %vm614, %v601, 0
        %v640 = vsel %vm614, %v602, 0
        %v643 = vsel %vm614, %v603, 0
        %v646 = vsel %vm614, %v604, 0
        %v649 = vsel %vm614, %v605, 0
        %v652 = vsel %vm614, %v606, 0
        %v655 = vsel %vm614, %v607, 0
        %v658 = vsel %vm614, %v608, 0
        %v661 = vsel %vm614, %v609, 0
        %663 = vmatpush.msra.mxu0 0.0
        %664 = vmatpush.msra.mxu0 0.0
        %665 = vmatpush.msra.mxu0 0.0
        %666 = vmatpush.msra.mxu0 0.0
        %667 = vmatpush.msra.mxu0 0.0
        %668 = vmatpush.msra.mxu0 0.0
        %669 = vmatpush.msra.mxu0 0.0
        %670 = vmatpush.msra.mxu0 0.0
        %671 = vmatpush.msra.mxu0 0.0
        %672 = vmatpush.msra.mxu0 0.0
        %673 = vmatpush.msra.mxu0 0.0
        %674 = vmatpush.msra.mxu0 0.0
        %675 = vmatpush.msra.mxu0 %v613
        %676 = vmatpush.msra.mxu0 %v612
        %677 = vmatpush.msra.mxu0 %v611
        %678 = vmatpush.msra.mxu0 %v610
        %679 = vmatmul.f32.gmra.mxu0 %v616
        %v680 = vpop.f32.mrf.mxu0
        %v681 = vadd.f32 0.0, %v680
        %682 = vmatmul.f32.gmra.mxu0 %v619
        %v683 = vpop.f32.mrf.mxu0
        %v684 = vadd.f32 0.0, %v683
        %685 = vmatmul.f32.gmra.mxu0 %v622
        %v686 = vpop.f32.mrf.mxu0
        %v687 = vadd.f32 0.0, %v686
        %688 = vmatmul.f32.gmra.mxu0 %v625
        %v689 = vpop.f32.mrf.mxu0
        %v690 = vadd.f32 0.0, %v689
        %691 = vmatmul.f32.gmra.mxu0 %v628
        %v692 = vpop.f32.mrf.mxu0
        %v693 = vadd.f32 0.0, %v692
        %694 = vmatmul.f32.gmra.mxu0 %v631
        %v695 = vpop.f32.mrf.mxu0
        %v696 = vadd.f32 0.0, %v695
        %697 = vmatmul.f32.gmra.mxu0 %v634
        %v698 = vpop.f32.mrf.mxu0
        %v699 = vadd.f32 0.0, %v698
        %700 = vmatmul.f32.gmra.mxu0 %v637
        %v701 = vpop.f32.mrf.mxu0
        %v702 = vadd.f32 0.0, %v701
        %703 = vmatmul.f32.gmra.mxu0 %v640
        %v704 = vpop.f32.mrf.mxu0
        %v705 = vadd.f32 0.0, %v704
        %706 = vmatmul.f32.gmra.mxu0 %v643
        %v707 = vpop.f32.mrf.mxu0
        %v708 = vadd.f32 0.0, %v707
        %709 = vmatmul.f32.gmra.mxu0 %v646
        %v710 = vpop.f32.mrf.mxu0
        %v711 = vadd.f32 0.0, %v710
        %712 = vmatmul.f32.gmra.mxu0 %v649
        %v713 = vpop.f32.mrf.mxu0
        %v714 = vadd.f32 0.0, %v713
        %715 = vmatmul.f32.gmra.mxu0 %v652
        %v716 = vpop.f32.mrf.mxu0
        %v717 = vadd.f32 0.0, %v716
        %718 = vmatmul.f32.gmra.mxu0 %v655
        %v719 = vpop.f32.mrf.mxu0
        %v720 = vadd.f32 0.0, %v719
        %721 = vmatmul.f32.gmra.mxu0 %v658
        %v722 = vpop.f32.mrf.mxu0
        %v723 = vadd.f32 0.0, %v722
        %724 = vmatmul.f32.gmra.mxu0 %v661
        %v725 = vpop.f32.mrf.mxu0
        %v726 = vadd.f32 0.0, %v725
        %727 = vdwg.mxu0
        %v728 = vld [vmem:[%s497] sm:$0xff]
        %v729 = vld [vmem:[%s497 + $0x8] sm:$0xff]
        %v730 = vld [vmem:[%s497 + $0x10] sm:$0xff]
        %v731 = vld [vmem:[%s497 + $0x18] sm:$0xff]
        %v732 = vld [vmem:[%s497 + $0x20] sm:$0xff]
        %v733 = vld [vmem:[%s497 + $0x28] sm:$0xff]
        %v734 = vld [vmem:[%s497 + $0x30] sm:$0xff]
        %v735 = vld [vmem:[%s497 + $0x38] sm:$0xff]
        %v736 = vld [vmem:[%s497 + $0x40] sm:$0xff]
        %v737 = vld [vmem:[%s497 + $0x48] sm:$0xff]
        %v738 = vld [vmem:[%s497 + $0x50] sm:$0xff]
        %v739 = vld [vmem:[%s497 + $0x58] sm:$0xff]
        %v740 = vld [vmem:[%s497 + $0x60] sm:$0xff]
        %v741 = vld [vmem:[%s497 + $0x68] sm:$0xff]
        %v742 = vld [vmem:[%s497 + $0x70] sm:$0xff]
        %v743 = vld [vmem:[%s497 + $0x78] sm:$0xff]
        %v744 = vmul.f32 %v728, %v681
        %v745 = vmul.f32 %v729, %v684
        %v746 = vmul.f32 %v730, %v687
        %v747 = vmul.f32 %v731, %v690
        %v748 = vmul.f32 %v732, %v693
        %v749 = vmul.f32 %v733, %v696
        %v750 = vmul.f32 %v734, %v699
        %v751 = vmul.f32 %v735, %v702
        %v752 = vmul.f32 %v736, %v705
        %v753 = vmul.f32 %v737, %v708
        %v754 = vmul.f32 %v738, %v711
        %v755 = vmul.f32 %v739, %v714
        %v756 = vmul.f32 %v740, %v717
        %v757 = vmul.f32 %v741, %v720
        %v758 = vmul.f32 %v742, %v723
        %v759 = vmul.f32 %v743, %v726
        %v760 = vsel %vm578, 1, 0
        %v761 = vsel %vm579, 1, 0
        %v762 = vsel %vm580, 1, 0
        %v763 = vsel %vm581, 1, 0
        %v764 = vsel %vm582, 1, 0
        %v765 = vsel %vm583, 1, 0
        %v766 = vsel %vm584, 1, 0
        %v767 = vsel %vm585, 1, 0
        %v768 = vsel %vm586, 1, 0
        %v769 = vsel %vm587, 1, 0
        %v770 = vsel %vm588, 1, 0
        %v771 = vsel %vm589, 1, 0
        %v772 = vsel %vm590, 1, 0
        %v773 = vsel %vm591, 1, 0
        %v774 = vsel %vm592, 1, 0
        %v775 = vsel %vm593, 1, 0
        %vm776 = vcmp.eq.s32.totalorder %v760, 1
        %vm777 = vcmp.eq.s32.totalorder %v761, 1
        %vm778 = vcmp.eq.s32.totalorder %v762, 1
        %vm779 = vcmp.eq.s32.totalorder %v763, 1
        %vm780 = vcmp.eq.s32.totalorder %v764, 1
        %vm781 = vcmp.eq.s32.totalorder %v765, 1
        %vm782 = vcmp.eq.s32.totalorder %v766, 1
        %vm783 = vcmp.eq.s32.totalorder %v767, 1
        %vm784 = vcmp.eq.s32.totalorder %v768, 1
        %vm785 = vcmp.eq.s32.totalorder %v769, 1
        %vm786 = vcmp.eq.s32.totalorder %v770, 1
        %vm787 = vcmp.eq.s32.totalorder %v771, 1
        %vm788 = vcmp.eq.s32.totalorder %v772, 1
        %vm789 = vcmp.eq.s32.totalorder %v773, 1
        %vm790 = vcmp.eq.s32.totalorder %v774, 1
        %vm791 = vcmp.eq.s32.totalorder %v775, 1
        %v792 = vsel %vm776, %v744, 0.0
        %v793 = vsel %vm777, %v745, 0.0
        %v794 = vsel %vm778, %v746, 0.0
        %v795 = vsel %vm779, %v747, 0.0
        %v796 = vsel %vm780, %v748, 0.0
        %v797 = vsel %vm781, %v749, 0.0
        %v798 = vsel %vm782, %v750, 0.0
        %v799 = vsel %vm783, %v751, 0.0
        %v800 = vsel %vm784, %v752, 0.0
        %v801 = vsel %vm785, %v753, 0.0
        %v802 = vsel %vm786, %v754, 0.0
        %v803 = vsel %vm787, %v755, 0.0
        %v804 = vsel %vm788, %v756, 0.0
        %v805 = vsel %vm789, %v757, 0.0
        %v806 = vsel %vm790, %v758, 0.0
        %v807 = vsel %vm791, %v759, 0.0
        %v808 = vld [vmem:[#allocation2] sm:$0xff]
        %v809 = vsel %vm614, %v792, 0.0
        %v810 = vsel %vm614, %v793, 0.0
        %v811 = vadd.f32 %v809, %v810
        %v812 = vsel %vm614, %v794, 0.0
        %v813 = vadd.f32 %v811, %v812
        %v814 = vsel %vm614, %v795, 0.0
        %v815 = vadd.f32 %v813, %v814
        %v816 = vsel %vm614, %v796, 0.0
        %v817 = vadd.f32 %v815, %v816
        %v818 = vsel %vm614, %v797, 0.0
        %v819 = vadd.f32 %v817, %v818
        %v820 = vsel %vm614, %v798, 0.0
        %v821 = vadd.f32 %v819, %v820
        %v822 = vsel %vm614, %v799, 0.0
        %v823 = vadd.f32 %v821, %v822
        %v824 = vsel %vm614, %v800, 0.0
        %v825 = vadd.f32 %v823, %v824
        %v826 = vsel %vm614, %v801, 0.0
        %v827 = vadd.f32 %v825, %v826
        %v828 = vsel %vm614, %v802, 0.0
        %v829 = vadd.f32 %v827, %v828
        %v830 = vsel %vm614, %v803, 0.0
        %v831 = vadd.f32 %v829, %v830
        %v832 = vsel %vm614, %v804, 0.0
        %v833 = vadd.f32 %v831, %v832
        %v834 = vsel %vm614, %v805, 0.0
        %v835 = vadd.f32 %v833, %v834
        %v836 = vsel %vm614, %v806, 0.0
        %v837 = vadd.f32 %v835, %v836
        %v838 = vsel %vm614, %v807, 0.0
        %v839 = vadd.f32 %v837, %v838
        %v840 = vadd.f32 %v808, %v839
        %841 = vst.msk [vmem:[#allocation2] sm:$0xff] %vm614, %v840
        %v842 = vld [vmem:[%s4] sm:$0xff]
        %v843 = vld [vmem:[%s4 + $0x8] sm:$0xff]
        %v844 = vld [vmem:[%s4 + $0x10] sm:$0xff]
        %v845 = vld [vmem:[%s4 + $0x18] sm:$0xff]
        %v846 = vld [vmem:[%s4 + $0x20] sm:$0xff]
        %v847 = vld [vmem:[%s4 + $0x28] sm:$0xff]
        %v848 = vld [vmem:[%s4 + $0x30] sm:$0xff]
        %v849 = vld [vmem:[%s4 + $0x38] sm:$0xff]
        %850 = vmatpush.msra.mxu0 0.0
        %851 = vmatpush.msra.mxu0 0.0
        %852 = vmatpush.msra.mxu0 0.0
        %853 = vmatpush.msra.mxu0 0.0
        %854 = vmatpush.msra.mxu0 0.0
        %855 = vmatpush.msra.mxu0 0.0
        %856 = vmatpush.msra.mxu0 0.0
        %857 = vmatpush.msra.mxu0 0.0
        %858 = vmatpush.msra.mxu0 0.0
        %859 = vmatpush.msra.mxu0 0.0
        %860 = vmatpush.msra.mxu0 0.0
        %861 = vmatpush.msra.mxu0 0.0
        %862 = vmatpush.msra.mxu0 %v848
        %863 = vmatpush.msra.mxu0 %v846
        %864 = vmatpush.msra.mxu0 %v844
        %865 = vmatpush.msra.mxu0 %v842
        %866 = vmatmul.f32.gmra.mxu0 %v616
        %v867 = vpop.f32.mrf.mxu0
        %v868 = vadd.f32 0.0, %v867
        %869 = vmatmul.f32.gmra.mxu0 %v619
        %v870 = vpop.f32.mrf.mxu0
        %v871 = vadd.f32 0.0, %v870
        %872 = vmatmul.f32.gmra.mxu0 %v622
        %v873 = vpop.f32.mrf.mxu0
        %v874 = vadd.f32 0.0, %v873
        %875 = vmatmul.f32.gmra.mxu0 %v625
        %v876 = vpop.f32.mrf.mxu0
        %v877 = vadd.f32 0.0, %v876
        %878 = vmatmul.f32.gmra.mxu0 %v628
        %v879 = vpop.f32.mrf.mxu0
        %v880 = vadd.f32 0.0, %v879
        %881 = vmatmul.f32.gmra.mxu0 %v631
        %v882 = vpop.f32.mrf.mxu0
        %v883 = vadd.f32 0.0, %v882
        %884 = vmatmul.f32.gmra.mxu0 %v634
        %v885 = vpop.f32.mrf.mxu0
        %v886 = vadd.f32 0.0, %v885
        %887 = vmatmul.f32.gmra.mxu0 %v637
        %v888 = vpop.f32.mrf.mxu0
        %v889 = vadd.f32 0.0, %v888
        %890 = vmatmul.f32.gmra.mxu0 %v640
        %v891 = vpop.f32.mrf.mxu0
        %v892 = vadd.f32 0.0, %v891
        %893 = vmatmul.f32.gmra.mxu0 %v643
        %v894 = vpop.f32.mrf.mxu0
        %v895 = vadd.f32 0.0, %v894
        %896 = vmatmul.f32.gmra.mxu0 %v646
        %v897 = vpop.f32.mrf.mxu0
        %v898 = vadd.f32 0.0, %v897
        %899 = vmatmul.f32.gmra.mxu0 %v649
        %v900 = vpop.f32.mrf.mxu0
        %v901 = vadd.f32 0.0, %v900
        %902 = vmatmul.f32.gmra.mxu0 %v652
        %v903 = vpop.f32.mrf.mxu0
        %v904 = vadd.f32 0.0, %v903
        %905 = vmatmul.f32.gmra.mxu0 %v655
        %v906 = vpop.f32.mrf.mxu0
        %v907 = vadd.f32 0.0, %v906
        %908 = vmatmul.f32.gmra.mxu0 %v658
        %v909 = vpop.f32.mrf.mxu0
        %v910 = vadd.f32 0.0, %v909
        %911 = vmatmul.f32.gmra.mxu0 %v661
        %v912 = vpop.f32.mrf.mxu0
        %v913 = vadd.f32 0.0, %v912
        %914 = vdwg.mxu0
        %915 = vmatpush.msra.mxu0 0.0
        %916 = vmatpush.msra.mxu0 0.0
        %917 = vmatpush.msra.mxu0 0.0
        %918 = vmatpush.msra.mxu0 0.0
        %919 = vmatpush.msra.mxu0 0.0
        %920 = vmatpush.msra.mxu0 0.0
        %921 = vmatpush.msra.mxu0 0.0
        %922 = vmatpush.msra.mxu0 0.0
        %923 = vmatpush.msra.mxu0 0.0
        %924 = vmatpush.msra.mxu0 0.0
        %925 = vmatpush.msra.mxu0 0.0
        %926 = vmatpush.msra.mxu0 0.0
        %927 = vmatpush.msra.mxu0 %v849
        %928 = vmatpush.msra.mxu0 %v847
        %929 = vmatpush.msra.mxu0 %v845
        %930 = vmatpush.msra.mxu0 %v843
        %931 = vmatmul.f32.gmra.mxu0 %v616
        %v932 = vpop.f32.mrf.mxu0
        %v933 = vadd.f32 0.0, %v932
        %934 = vmatmul.f32.gmra.mxu0 %v619
        %v935 = vpop.f32.mrf.mxu0
        %v936 = vadd.f32 0.0, %v935
        %937 = vmatmul.f32.gmra.mxu0 %v622
        %v938 = vpop.f32.mrf.mxu0
        %v939 = vadd.f32 0.0, %v938
        %940 = vmatmul.f32.gmra.mxu0 %v625
        %v941 = vpop.f32.mrf.mxu0
        %v942 = vadd.f32 0.0, %v941
        %943 = vmatmul.f32.gmra.mxu0 %v628
        %v944 = vpop.f32.mrf.mxu0
        %v945 = vadd.f32 0.0, %v944
        %946 = vmatmul.f32.gmra.mxu0 %v631
        %v947 = vpop.f32.mrf.mxu0
        %v948 = vadd.f32 0.0, %v947
        %949 = vmatmul.f32.gmra.mxu0 %v634
        %v950 = vpop.f32.mrf.mxu0
        %v951 = vadd.f32 0.0, %v950
        %952 = vmatmul.f32.gmra.mxu0 %v637
        %v953 = vpop.f32.mrf.mxu0
        %v954 = vadd.f32 0.0, %v953
        %955 = vmatmul.f32.gmra.mxu0 %v640
        %v956 = vpop.f32.mrf.mxu0
        %v957 = vadd.f32 0.0, %v956
        %958 = vmatmul.f32.gmra.mxu0 %v643
        %v959 = vpop.f32.mrf.mxu0
        %v960 = vadd.f32 0.0, %v959
        %961 = vmatmul.f32.gmra.mxu0 %v646
        %v962 = vpop.f32.mrf.mxu0
        %v963 = vadd.f32 0.0, %v962
        %964 = vmatmul.f32.gmra.mxu0 %v649
        %v965 = vpop.f32.mrf.mxu0
        %v966 = vadd.f32 0.0, %v965
        %967 = vmatmul.f32.gmra.mxu0 %v652
        %v968 = vpop.f32.mrf.mxu0
        %v969 = vadd.f32 0.0, %v968
        %970 = vmatmul.f32.gmra.mxu0 %v655
        %v971 = vpop.f32.mrf.mxu0
        %v972 = vadd.f32 0.0, %v971
        %973 = vmatmul.f32.gmra.mxu0 %v658
        %v974 = vpop.f32.mrf.mxu0
        %v975 = vadd.f32 0.0, %v974
        %976 = vmatmul.f32.gmra.mxu0 %v661
        %v977 = vpop.f32.mrf.mxu0
        %v978 = vadd.f32 0.0, %v977
        %979 = vdwg.mxu0
        %v980 = vld [vmem:[%s521] sm:$0xff]
        %v981 = vld [vmem:[%s521 + $0x8] sm:$0xff]
        %v982 = vld [vmem:[%s521 + $0x10] sm:$0xff]
        %v983 = vld [vmem:[%s521 + $0x18] sm:$0xff]
        %v984 = vld [vmem:[%s521 + $0x20] sm:$0xff]
        %v985 = vld [vmem:[%s521 + $0x28] sm:$0xff]
        %v986 = vld [vmem:[%s521 + $0x30] sm:$0xff]
        %v987 = vld [vmem:[%s521 + $0x38] sm:$0xff]
        %v988 = vld [vmem:[%s521 + $0x40] sm:$0xff]
        %v989 = vld [vmem:[%s521 + $0x48] sm:$0xff]
        %v990 = vld [vmem:[%s521 + $0x50] sm:$0xff]
        %v991 = vld [vmem:[%s521 + $0x58] sm:$0xff]
        %v992 = vld [vmem:[%s521 + $0x60] sm:$0xff]
        %v993 = vld [vmem:[%s521 + $0x68] sm:$0xff]
        %v994 = vld [vmem:[%s521 + $0x70] sm:$0xff]
        %v995 = vld [vmem:[%s521 + $0x78] sm:$0xff]
        %v996 = vld [vmem:[%s521 + $0x80] sm:$0xff]
        %v997 = vld [vmem:[%s521 + $0x88] sm:$0xff]
        %v998 = vld [vmem:[%s521 + $0x90] sm:$0xff]
        %v999 = vld [vmem:[%s521 + $0x98] sm:$0xff]
        %v1000 = vld [vmem:[%s521 + $0xa0] sm:$0xff]
        %v1001 = vld [vmem:[%s521 + $0xa8] sm:$0xff]
        %v1002 = vld [vmem:[%s521 + $0xb0] sm:$0xff]
        %v1003 = vld [vmem:[%s521 + $0xb8] sm:$0xff]
        %v1004 = vld [vmem:[%s521 + $0xc0] sm:$0xff]
        %v1005 = vld [vmem:[%s521 + $0xc8] sm:$0xff]
        %v1006 = vld [vmem:[%s521 + $0xd0] sm:$0xff]
        %v1007 = vld [vmem:[%s521 + $0xd8] sm:$0xff]
        %v1008 = vld [vmem:[%s521 + $0xe0] sm:$0xff]
        %v1009 = vld [vmem:[%s521 + $0xe8] sm:$0xff]
        %v1010 = vld [vmem:[%s521 + $0xf0] sm:$0xff]
        %v1011 = vld [vmem:[%s521 + $0xf8] sm:$0xff]
        %v1012 = vmul.f32 %v980, %v868
        %v1013 = vmul.f32 %v981, %v933
        %v1014 = vmul.f32 %v982, %v871
        %v1015 = vmul.f32 %v983, %v936
        %v1016 = vmul.f32 %v984, %v874
        %v1017 = vmul.f32 %v985, %v939
        %v1018 = vmul.f32 %v986, %v877
        %v1019 = vmul.f32 %v987, %v942
        %v1020 = vmul.f32 %v988, %v880
        %v1021 = vmul.f32 %v989, %v945
        %v1022 = vmul.f32 %v990, %v883
        %v1023 = vmul.f32 %v991, %v948
        %v1024 = vmul.f32 %v992, %v886
        %v1025 = vmul.f32 %v993, %v951
        %v1026 = vmul.f32 %v994, %v889
        %v1027 = vmul.f32 %v995, %v954
        %v1028 = vmul.f32 %v996, %v892
        %v1029 = vmul.f32 %v997, %v957
        %v1030 = vmul.f32 %v998, %v895
        %v1031 = vmul.f32 %v999, %v960
        %v1032 = vmul.f32 %v1000, %v898
        %v1033 = vmul.f32 %v1001, %v963
        %v1034 = vmul.f32 %v1002, %v901
        %v1035 = vmul.f32 %v1003, %v966
        %v1036 = vmul.f32 %v1004, %v904
        %v1037 = vmul.f32 %v1005, %v969
        %v1038 = vmul.f32 %v1006, %v907
        %v1039 = vmul.f32 %v1007, %v972
        %v1040 = vmul.f32 %v1008, %v910
        %v1041 = vmul.f32 %v1009, %v975
        %v1042 = vmul.f32 %v1010, %v913
        %v1043 = vmul.f32 %v1011, %v978
        %v1044 = vld [vmem:[%s5] sm:$0xff]
        %v1045 = vld [vmem:[%s5 + $0x8] sm:$0xff]
        %v1046 = vld [vmem:[%s5 + $0x10] sm:$0xff]
        %v1047 = vld [vmem:[%s5 + $0x18] sm:$0xff]
        %v1048 = vld [vmem:[%s5 + $0x20] sm:$0xff]
        %v1049 = vld [vmem:[%s5 + $0x28] sm:$0xff]
        %v1050 = vld [vmem:[%s5 + $0x30] sm:$0xff]
        %v1051 = vld [vmem:[%s5 + $0x38] sm:$0xff]
        %v1052 = vld [vmem:[%s5 + $0x40] sm:$0xff]
        %v1053 = vld [vmem:[%s5 + $0x48] sm:$0xff]
        %v1054 = vld [vmem:[%s5 + $0x50] sm:$0xff]
        %v1055 = vld [vmem:[%s5 + $0x58] sm:$0xff]
        %v1056 = vld [vmem:[%s5 + $0x60] sm:$0xff]
        %v1057 = vld [vmem:[%s5 + $0x68] sm:$0xff]
        %v1058 = vld [vmem:[%s5 + $0x70] sm:$0xff]
        %v1059 = vld [vmem:[%s5 + $0x78] sm:$0xff]
        %v1060 = vld [vmem:[%s5 + $0x80] sm:$0xff]
        %v1061 = vld [vmem:[%s5 + $0x88] sm:$0xff]
        %v1062 = vld [vmem:[%s5 + $0x90] sm:$0xff]
        %v1063 = vld [vmem:[%s5 + $0x98] sm:$0xff]
        %v1064 = vld [vmem:[%s5 + $0xa0] sm:$0xff]
        %v1065 = vld [vmem:[%s5 + $0xa8] sm:$0xff]
        %v1066 = vld [vmem:[%s5 + $0xb0] sm:$0xff]
        %v1067 = vld [vmem:[%s5 + $0xb8] sm:$0xff]
        %v1068 = vld [vmem:[%s5 + $0xc0] sm:$0xff]
        %v1069 = vld [vmem:[%s5 + $0xc8] sm:$0xff]
        %v1070 = vld [vmem:[%s5 + $0xd0] sm:$0xff]
        %v1071 = vld [vmem:[%s5 + $0xd8] sm:$0xff]
        %v1072 = vld [vmem:[%s5 + $0xe0] sm:$0xff]
        %v1073 = vld [vmem:[%s5 + $0xe8] sm:$0xff]
        %v1074 = vld [vmem:[%s5 + $0xf0] sm:$0xff]
        %v1075 = vld [vmem:[%s5 + $0xf8] sm:$0xff]
        %1076 = vmatpush.msra.mxu0 %v1059
        %1077 = vmatpush.msra.mxu0 %v1058
        %1078 = vmatpush.msra.mxu0 %v1057
        %1079 = vmatpush.msra.mxu0 %v1056
        %1080 = vmatpush.msra.mxu0 %v1055
        %1081 = vmatpush.msra.mxu0 %v1054
        %1082 = vmatpush.msra.mxu0 %v1053
        %1083 = vmatpush.msra.mxu0 %v1052
        %1084 = vmatpush.msra.mxu0 %v1051
        %1085 = vmatpush.msra.mxu0 %v1050
        %1086 = vmatpush.msra.mxu0 %v1049
        %1087 = vmatpush.msra.mxu0 %v1048
        %1088 = vmatpush.msra.mxu0 %v1047
        %1089 = vmatpush.msra.mxu0 %v1046
        %1090 = vmatpush.msra.mxu0 %v1045
        %1091 = vmatpush.msra.mxu0 %v1044
        %1092 = vmatmul.f32.gmra.mxu0 %v1012
        %v1093 = vpop.f32.mrf.mxu0
        %v1094 = vadd.f32 0.0, %v1093
        %1095 = vmatmul.f32.gmra.mxu0 %v1014
        %v1096 = vpop.f32.mrf.mxu0
        %v1097 = vadd.f32 0.0, %v1096
        %1098 = vmatmul.f32.gmra.mxu0 %v1016
        %v1099 = vpop.f32.mrf.mxu0
        %v1100 = vadd.f32 0.0, %v1099
        %1101 = vmatmul.f32.gmra.mxu0 %v1018
        %v1102 = vpop.f32.mrf.mxu0
        %v1103 = vadd.f32 0.0, %v1102
        %1104 = vmatmul.f32.gmra.mxu0 %v1020
        %v1105 = vpop.f32.mrf.mxu0
        %v1106 = vadd.f32 0.0, %v1105
        %1107 = vmatmul.f32.gmra.mxu0 %v1022
        %v1108 = vpop.f32.mrf.mxu0
        %v1109 = vadd.f32 0.0, %v1108
        %1110 = vmatmul.f32.gmra.mxu0 %v1024
        %v1111 = vpop.f32.mrf.mxu0
        %v1112 = vadd.f32 0.0, %v1111
        %1113 = vmatmul.f32.gmra.mxu0 %v1026
        %v1114 = vpop.f32.mrf.mxu0
        %v1115 = vadd.f32 0.0, %v1114
        %1116 = vmatmul.f32.gmra.mxu0 %v1028
        %v1117 = vpop.f32.mrf.mxu0
        %v1118 = vadd.f32 0.0, %v1117
        %1119 = vmatmul.f32.gmra.mxu0 %v1030
        %v1120 = vpop.f32.mrf.mxu0
        %v1121 = vadd.f32 0.0, %v1120
        %1122 = vmatmul.f32.gmra.mxu0 %v1032
        %v1123 = vpop.f32.mrf.mxu0
        %v1124 = vadd.f32 0.0, %v1123
        %1125 = vmatmul.f32.gmra.mxu0 %v1034
        %v1126 = vpop.f32.mrf.mxu0
        %v1127 = vadd.f32 0.0, %v1126
        %1128 = vmatmul.f32.gmra.mxu0 %v1036
        %v1129 = vpop.f32.mrf.mxu0
        %v1130 = vadd.f32 0.0, %v1129
        %1131 = vmatmul.f32.gmra.mxu0 %v1038
        %v1132 = vpop.f32.mrf.mxu0
        %v1133 = vadd.f32 0.0, %v1132
        %1134 = vmatmul.f32.gmra.mxu0 %v1040
        %v1135 = vpop.f32.mrf.mxu0
        %v1136 = vadd.f32 0.0, %v1135
        %1137 = vmatmul.f32.gmra.mxu0 %v1042
        %v1138 = vpop.f32.mrf.mxu0
        %v1139 = vadd.f32 0.0, %v1138
        %1140 = vdwg.mxu0
        %1141 = vmatpush.msra.mxu0 %v1075
        %1142 = vmatpush.msra.mxu0 %v1074
        %1143 = vmatpush.msra.mxu0 %v1073
        %1144 = vmatpush.msra.mxu0 %v1072
        %1145 = vmatpush.msra.mxu0 %v1071
        %1146 = vmatpush.msra.mxu0 %v1070
        %1147 = vmatpush.msra.mxu0 %v1069
        %1148 = vmatpush.msra.mxu0 %v1068
        %1149 = vmatpush.msra.mxu0 %v1067
        %1150 = vmatpush.msra.mxu0 %v1066
        %1151 = vmatpush.msra.mxu0 %v1065
        %1152 = vmatpush.msra.mxu0 %v1064
        %1153 = vmatpush.msra.mxu0 %v1063
        %1154 = vmatpush.msra.mxu0 %v1062
        %1155 = vmatpush.msra.mxu0 %v1061
        %1156 = vmatpush.msra.mxu0 %v1060
        %1157 = vmatmul.f32.gmra.mxu0 %v1013
        %v1158 = vpop.f32.mrf.mxu0
        %v1159 = vadd.f32 %v1094, %v1158
        %1160 = vmatmul.f32.gmra.mxu0 %v1015
        %v1161 = vpop.f32.mrf.mxu0
        %v1162 = vadd.f32 %v1097, %v1161
        %1163 = vmatmul.f32.gmra.mxu0 %v1017
        %v1164 = vpop.f32.mrf.mxu0
        %v1165 = vadd.f32 %v1100, %v1164
        %1166 = vmatmul.f32.gmra.mxu0 %v1019
        %v1167 = vpop.f32.mrf.mxu0
        %v1168 = vadd.f32 %v1103, %v1167
        %1169 = vmatmul.f32.gmra.mxu0 %v1021
        %v1170 = vpop.f32.mrf.mxu0
        %v1171 = vadd.f32 %v1106, %v1170
        %1172 = vmatmul.f32.gmra.mxu0 %v1023
        %v1173 = vpop.f32.mrf.mxu0
        %v1174 = vadd.f32 %v1109, %v1173
        %1175 = vmatmul.f32.gmra.mxu0 %v1025
        %v1176 = vpop.f32.mrf.mxu0
        %v1177 = vadd.f32 %v1112, %v1176
        %1178 = vmatmul.f32.gmra.mxu0 %v1027
        %v1179 = vpop.f32.mrf.mxu0
        %v1180 = vadd.f32 %v1115, %v1179
        %1181 = vmatmul.f32.gmra.mxu0 %v1029
        %v1182 = vpop.f32.mrf.mxu0
        %v1183 = vadd.f32 %v1118, %v1182
        %1184 = vmatmul.f32.gmra.mxu0 %v1031
        %v1185 = vpop.f32.mrf.mxu0
        %v1186 = vadd.f32 %v1121, %v1185
        %1187 = vmatmul.f32.gmra.mxu0 %v1033
        %v1188 = vpop.f32.mrf.mxu0
        %v1189 = vadd.f32 %v1124, %v1188
        %1190 = vmatmul.f32.gmra.mxu0 %v1035
        %v1191 = vpop.f32.mrf.mxu0
        %v1192 = vadd.f32 %v1127, %v1191
        %1193 = vmatmul.f32.gmra.mxu0 %v1037
        %v1194 = vpop.f32.mrf.mxu0
        %v1195 = vadd.f32 %v1130, %v1194
        %1196 = vmatmul.f32.gmra.mxu0 %v1039
        %v1197 = vpop.f32.mrf.mxu0
        %v1198 = vadd.f32 %v1133, %v1197
        %1199 = vmatmul.f32.gmra.mxu0 %v1041
        %v1200 = vpop.f32.mrf.mxu0
        %v1201 = vadd.f32 %v1136, %v1200
        %1202 = vmatmul.f32.gmra.mxu0 %v1043
        %v1203 = vpop.f32.mrf.mxu0
        %v1204 = vadd.f32 %v1139, %v1203
        %1205 = vdwg.mxu0
        %v1206 = vsel %vm776, %v1159, -1e+30
        %v1207 = vsel %vm777, %v1162, -1e+30
        %v1208 = vsel %vm778, %v1165, -1e+30
        %v1209 = vsel %vm779, %v1168, -1e+30
        %v1210 = vsel %vm780, %v1171, -1e+30
        %v1211 = vsel %vm781, %v1174, -1e+30
        %v1212 = vsel %vm782, %v1177, -1e+30
        %v1213 = vsel %vm783, %v1180, -1e+30
        %v1214 = vsel %vm784, %v1183, -1e+30
        %v1215 = vsel %vm785, %v1186, -1e+30
        %v1216 = vsel %vm786, %v1189, -1e+30
        %v1217 = vsel %vm787, %v1192, -1e+30
        %v1218 = vsel %vm788, %v1195, -1e+30
        %v1219 = vsel %vm789, %v1198, -1e+30
        %v1220 = vsel %vm790, %v1201, -1e+30
        %v1221 = vsel %vm791, %v1204, -1e+30
        %v1222 = vld [vmem:[#allocation3] sm:$0xff]
        %vm1223 = vcmask 64512
        %v1224 = vsel %vm1223, %v1206, -inf
        %v1225 = vsel %vm1223, %v1207, -inf
        %v1226 = vsel %vm1223, %v1208, -inf
        %v1227 = vsel %vm1223, %v1209, -inf
        %v1228 = vsel %vm1223, %v1210, -inf
        %v1229 = vmax.f32 %v1224, %v1228
        %v1230 = vsel %vm1223, %v1211, -inf
        %v1231 = vmax.f32 %v1225, %v1230
        %v1232 = vsel %vm1223, %v1212, -inf
        %v1233 = vmax.f32 %v1226, %v1232
        %v1234 = vsel %vm1223, %v1213, -inf
        %v1235 = vmax.f32 %v1227, %v1234
        %v1236 = vsel %vm1223, %v1214, -inf
        %v1237 = vmax.f32 %v1229, %v1236
        %v1238 = vsel %vm1223, %v1215, -inf
        %v1239 = vmax.f32 %v1231, %v1238
        %v1240 = vsel %vm1223, %v1216, -inf
        %v1241 = vmax.f32 %v1233, %v1240
        %v1242 = vsel %vm1223, %v1217, -inf
        %v1243 = vmax.f32 %v1235, %v1242
        %v1244 = vsel %vm1223, %v1218, -inf
        %v1245 = vmax.f32 %v1237, %v1244
        %v1246 = vsel %vm1223, %v1219, -inf
        %v1247 = vmax.f32 %v1239, %v1246
        %v1248 = vsel %vm1223, %v1220, -inf
        %v1249 = vmax.f32 %v1241, %v1248
        %v1250 = vsel %vm1223, %v1221, -inf
        %v1251 = vmax.f32 %v1243, %v1250
        %v1252 = vmax.f32 %v1245, %v1247
        %v1253 = vmax.f32 %v1249, %v1251
        %v1254 = vmax.f32 %v1252, %v1253
        %v1255 = vmax.f32 %v1222, %v1254
        %v1256 = vld [vmem:[#allocation4] sm:$0xff]
        %v1257 = vsub.f32 %v1222, %v1255
        %v1258 = vmul.f32 %v1257, 1.442695
        %v1259 = vpow.pop %v1258
        %v1260 = vmul.f32 %v1256, %v1259
        %v1261 = vsub.f32 %v1206, %v1255
        %v1262 = vsub.f32 %v1207, %v1255
        %v1263 = vsub.f32 %v1208, %v1255
        %v1264 = vsub.f32 %v1209, %v1255
        %v1265 = vsub.f32 %v1210, %v1255
        %v1266 = vsub.f32 %v1211, %v1255
        %v1267 = vsub.f32 %v1212, %v1255
        %v1268 = vsub.f32 %v1213, %v1255
        %v1269 = vsub.f32 %v1214, %v1255
        %v1270 = vsub.f32 %v1215, %v1255
        %v1271 = vsub.f32 %v1216, %v1255
        %v1272 = vsub.f32 %v1217, %v1255
        %v1273 = vsub.f32 %v1218, %v1255
        %v1274 = vsub.f32 %v1219, %v1255
        %v1275 = vsub.f32 %v1220, %v1255
        %v1276 = vsub.f32 %v1221, %v1255
        %v1277 = vmul.f32 %v1261, 1.442695
        %v1278 = vpow.pop %v1277
        %v1279 = vmul.f32 %v1262, 1.442695
        %v1280 = vpow.pop %v1279
        %v1281 = vmul.f32 %v1263, 1.442695
        %v1282 = vpow.pop %v1281
        %v1283 = vmul.f32 %v1264, 1.442695
        %v1284 = vpow.pop %v1283
        %v1285 = vmul.f32 %v1265, 1.442695
        %v1286 = vpow.pop %v1285
        %v1287 = vmul.f32 %v1266, 1.442695
        %v1288 = vpow.pop %v1287
        %v1289 = vmul.f32 %v1267, 1.442695
        %v1290 = vpow.pop %v1289
        %v1291 = vmul.f32 %v1268, 1.442695
        %v1292 = vpow.pop %v1291
        %v1293 = vmul.f32 %v1269, 1.442695
        %v1294 = vpow.pop %v1293
        %v1295 = vmul.f32 %v1270, 1.442695
        %v1296 = vpow.pop %v1295
        %v1297 = vmul.f32 %v1271, 1.442695
        %v1298 = vpow.pop %v1297
        %v1299 = vmul.f32 %v1272, 1.442695
        %v1300 = vpow.pop %v1299
        %v1301 = vmul.f32 %v1273, 1.442695
        %v1302 = vpow.pop %v1301
        %v1303 = vmul.f32 %v1274, 1.442695
        %v1304 = vpow.pop %v1303
        %v1305 = vmul.f32 %v1275, 1.442695
        %v1306 = vpow.pop %v1305
        %v1307 = vmul.f32 %v1276, 1.442695
        %v1308 = vpow.pop %v1307
        %v1309 = vsel %vm1223, %v1278, 0.0
        %v1310 = vsel %vm1223, %v1280, 0.0
        %v1311 = vadd.f32 %v1309, %v1310
        %v1312 = vsel %vm1223, %v1282, 0.0
        %v1313 = vadd.f32 %v1311, %v1312
        %v1314 = vsel %vm1223, %v1284, 0.0
        %v1315 = vadd.f32 %v1313, %v1314
        %v1316 = vsel %vm1223, %v1286, 0.0
        %v1317 = vadd.f32 %v1315, %v1316
        %v1318 = vsel %vm1223, %v1288, 0.0
        %v1319 = vadd.f32 %v1317, %v1318
        %v1320 = vsel %vm1223, %v1290, 0.0
        %v1321 = vadd.f32 %v1319, %v1320
        %v1322 = vsel %vm1223, %v1292, 0.0
        %v1323 = vadd.f32 %v1321, %v1322
        %v1324 = vsel %vm1223, %v1294, 0.0
        %v1325 = vadd.f32 %v1323, %v1324
        %v1326 = vsel %vm1223, %v1296, 0.0
        %v1327 = vadd.f32 %v1325, %v1326
        %v1328 = vsel %vm1223, %v1298, 0.0
        %v1329 = vadd.f32 %v1327, %v1328
        %v1330 = vsel %vm1223, %v1300, 0.0
        %v1331 = vadd.f32 %v1329, %v1330
        %v1332 = vsel %vm1223, %v1302, 0.0
        %v1333 = vadd.f32 %v1331, %v1332
        %v1334 = vsel %vm1223, %v1304, 0.0
        %v1335 = vadd.f32 %v1333, %v1334
        %v1336 = vsel %vm1223, %v1306, 0.0
        %v1337 = vadd.f32 %v1335, %v1336
        %v1338 = vsel %vm1223, %v1308, 0.0
        %v1339 = vadd.f32 %v1337, %v1338
        %v1340 = vadd.f32 %v1260, %v1339
        %1341 = vst.msk [vmem:[#allocation4] sm:$0xff] %vm1223, %v1340
        %1342 = vst.msk [vmem:[#allocation3] sm:$0xff] %vm1223, %v1255
        %p1343 = scmp.eq.s32.totalorder %s31, 1
        // Predicated region
        $region49: #{tpu_custom_call.1} parent=43 // pred_check
          %p1344 = pneg %p1343
        $region50: #{tpu_custom_call.1} parent=43 // pred_check_branch
          %1346 = sbr.rel (%p1344) target = $region52
        $region51: #{tpu_custom_call.1} parent=43 // pred_region
          %v1347 = vld [vmem:[#allocation2] sm:$0xff]
          %1348 = vst.msk [vmem:[%s448] sm:$0xff] %vm614, %v1347
          %v1349 = vld [vmem:[#allocation3] sm:$0xff]
          %1350 = vst.msk [vmem:[%s455] sm:$0xff] %vm1223, %v1349
          %v1351 = vld [vmem:[#allocation4] sm:$0xff]
          %1352 = vst.msk [vmem:[%s462] sm:$0xff] %vm1223, %v1351
        $region52: #{tpu_custom_call.1} parent=43 // pred_fallthru
          _
        %s1353 = sand.u32 %s211, 1
        %s1354 = scalar_lea.sflag [#allocation6], %s1353
        %s1355 = sand.u32 %s211, 1
        %s1356 = smul.addr %s1355, 8
        %s1357 = scalar_lea.vmem [#allocation5], %s1356
        %s1358 = sand.u32 %s26, 1
        %s1359 = scalar_lea.sflag [#allocation8], %s1358
        %s1360 = sand.u32 %s237, 1
        %s1361 = smul.addr %s1360, 8
        %s1362 = scalar_lea.vmem [#allocation7], %s1361
        %s1363 = sand.u32 %s26, 1
        %s1364 = scalar_lea.sflag [#allocation8], %s1363
        %s1365 = sand.u32 %s263, 1
        %s1366 = smul.addr %s1365, 8
        %s1367 = scalar_lea.vmem [#allocation9], %s1366
        // Predicated region
        $region53: #{tpu_custom_call.1} parent=43 // pred_check
          %p1368 = pneg %p221
        $region54: #{tpu_custom_call.1} parent=43 // pred_check_branch
          %1370 = sbr.rel (%p1368) target = $region56
        $region55: #{tpu_custom_call.1} parent=43 // pred_region
          %1372 = vsyncadd %s1354, 0
          %s1373 = smul.addr %s30, 8
          %s1374 = scalar_lea.hbm %s6, %s1373
          %s1376 = sshll.u32 %s1357, 4
          %s1377 = int_to_ptr.vmem [resolvable:$true] %s1376
          %s1378 = sshll.u32 %s1374, 4
          %s1379 = int_to_ptr.hbm [resolvable:$true] %s1378
          %1381 = dma.vmem_to_hbm [thread:$0]  %s1377, 128, %s1379, %s1354
        $region56: #{tpu_custom_call.1} parent=43 // pred_fallthru
          _
        // Predicated region
        $region57: #{tpu_custom_call.1} parent=43 // pred_check
          %p1382 = pneg %p247
        $region58: #{tpu_custom_call.1} parent=43 // pred_check_branch
          %1384 = sbr.rel (%p1382) target = $region60
        $region59: #{tpu_custom_call.1} parent=43 // pred_region
          %1386 = vsyncadd %s1359, 0
          %s1387 = smul.addr %s30, 8
          %s1388 = scalar_lea.hbm %s7, %s1387
          %s1390 = sshll.u32 %s1362, 4
          %s1391 = int_to_ptr.vmem [resolvable:$true] %s1390
          %s1392 = sshll.u32 %s1388, 4
          %s1393 = int_to_ptr.hbm [resolvable:$true] %s1392
          %1395 = dma.vmem_to_hbm [thread:$0]  %s1391, 128, %s1393, %s1359
        $region60: #{tpu_custom_call.1} parent=43 // pred_fallthru
          _
        // Predicated region
        $region61: #{tpu_custom_call.1} parent=43 // pred_check
          %p1396 = pneg %p273
        $region62: #{tpu_custom_call.1} parent=43 // pred_check_branch
          %1398 = sbr.rel (%p1396) target = $region64
        $region63: #{tpu_custom_call.1} parent=43 // pred_region
          %1400 = vsyncadd %s1364, 0
          %s1401 = smul.addr %s30, 8
          %s1402 = scalar_lea.hbm %s8, %s1401
          %s1404 = sshll.u32 %s1367, 4
          %s1405 = int_to_ptr.vmem [resolvable:$true] %s1404
          %s1406 = sshll.u32 %s1402, 4
          %s1407 = int_to_ptr.hbm [resolvable:$true] %s1406
          %1409 = dma.vmem_to_hbm [thread:$0]  %s1405, 128, %s1407, %s1364
        $region64: #{tpu_custom_call.1} parent=43 // pred_fallthru
          _
      $region44: #{tpu_custom_call.1} parent=5 // pred_fallthru
        _
      %p1410 = scmp.le.s32.totalorder 2, %s21
      // Predicated region
      $region65: #{tpu_custom_call.1} parent=5 // pred_check
        %p1411 = pneg %p1410
      $region66: #{tpu_custom_call.1} parent=5 // pred_check_branch
        %1413 = sbr.rel (%p1411) target = $region68
      $region67: #{tpu_custom_call.1} parent=5 // pred_region
        %s1414 = ssub.s32 %s21, 2
        // Predicated region
        $region69: #{tpu_custom_call.1} parent=67 // pred_check
          %p1415 = pneg %p227
        $region70: #{tpu_custom_call.1} parent=67 // pred_check_branch
          %1417 = sbr.rel (%p1415) target = $region72
        $region71: #{tpu_custom_call.1} parent=67 // pred_region
          %s1418 = sand.u32 %s212, 1
          %s1419 = scalar_lea.sflag [#allocation6], %s1418
          %s1420 = sand.u32 %s212, 1
          %s1421 = smul.addr %s1420, 8
          %s1422 = scalar_lea.vmem [#allocation5], %s1421
          %1424 = dma.done %s1419, 128
        $region72: #{tpu_custom_call.1} parent=67 // pred_fallthru
          _
        // Predicated region
        $region73: #{tpu_custom_call.1} parent=67 // pred_check
          %p1425 = pneg %p253
        $region74: #{tpu_custom_call.1} parent=67 // pred_check_branch
          %1427 = sbr.rel (%p1425) target = $region76
        $region75: #{tpu_custom_call.1} parent=67 // pred_region
          %s1428 = sand.u32 %s27, 1
          %s1429 = scalar_lea.sflag [#allocation8], %s1428
          %s1430 = sand.u32 %s238, 1
          %s1431 = smul.addr %s1430, 8
          %s1432 = scalar_lea.vmem [#allocation7], %s1431
          %1434 = dma.done %s1429, 128
        $region76: #{tpu_custom_call.1} parent=67 // pred_fallthru
          _
        // Predicated region
        $region77: #{tpu_custom_call.1} parent=67 // pred_check
          %p1435 = pneg %p279
        $region78: #{tpu_custom_call.1} parent=67 // pred_check_branch
          %1437 = sbr.rel (%p1435) target = $region80
        $region79: #{tpu_custom_call.1} parent=67 // pred_region
          %s1438 = sand.u32 %s27, 1
          %s1439 = scalar_lea.sflag [#allocation8], %s1438
          %s1440 = sand.u32 %s264, 1
          %s1441 = smul.addr %s1440, 8
          %s1442 = scalar_lea.vmem [#allocation9], %s1441
          %1444 = dma.done %s1439, 128
        $region80: #{tpu_custom_call.1} parent=67 // pred_fallthru
          _
      $region68: #{tpu_custom_call.1} parent=5 // pred_fallthru
        _
    $region6: #{tpu_custom_call.1} parent=1 // loop_footer
      %s25 = sadd.s32 1, %s21
    $region7: #{tpu_custom_call.1} parent=1 // loop_footer_branch
      %20 = sbr.rel target = $region3
    $region8: #{tpu_custom_call.1} parent=1 // loop_exit
      _
    %1445 = vsyncpa [#allocation6], 1
    %s1446 = scalar_lea.sflag [#allocation6], 1
    %1447 = vsyncpa %s1446, 1
    %1448 = vsyncpa [#allocation8], 1
    %s1449 = scalar_lea.sflag [#allocation8], 1
    %1450 = vsyncpa %s1449, 1

</llo_original>
